<compile_context>
chip_gen: v7x
topology: tpu7x:2x2x1
jax: 0.10.0
libtpu: 0.0.40
codegen_flags: <defaults>
</compile_context>

<pallas_src>
import functools

import jax
import jax.numpy as jnp
from jax.experimental import pallas as pl
from jax.experimental.pallas import tpu as pltpu

_EPS = 1e-5
_LEAKY_SLOPE = 0.1
_C1_OUT = 128          # conv1 output channels
_HEAD_PAD = 128        # lane-dense padded head width (10 + 2 + 2 -> 128)


# ----------------------------------------------------------------------------
# Fused kernel: conv1 matmul (K-reduction) + BatchNorm(train) + LeakyReLU +
#               disc/mu/var heads (+exp on var columns).
# ----------------------------------------------------------------------------
def _qhead_kernel(a_ref, w_ref, bn_ref, hw_ref, hb_ref, out_ref, acc_ref, *,
                  n_valid, var_lo, var_hi):
    k = pl.program_id(0)

    @pl.when(k == 0)
    def _():
        acc_ref[...] = jnp.zeros_like(acc_ref)

    # bf16 x bf16 -> f32 accumulation on the MXU.
    acc_ref[...] += jnp.dot(a_ref[...], w_ref[...],
                            preferred_element_type=jnp.float32)

    @pl.when(k == pl.num_programs(0) - 1)
    def _():
        z = acc_ref[...]                                   # (Mpad, 128) f32
        # BatchNorm batch statistics. Padded batch rows of A are zero, so the
        # column sums over all Mpad rows equal the sums over the valid rows.
        inv_n = 1.0 / n_valid
        mean = jnp.sum(z, axis=0, keepdims=True) * inv_n
        ex2 = jnp.sum(z * z, axis=0, keepdims=True) * inv_n
        var = jnp.maximum(ex2 - mean * mean, 0.0)          # biased variance
        inv = jax.lax.rsqrt(var + _EPS)
        bn = bn_ref[...]                                   # (2, 128): gamma;beta
        scale = bn[0:1, :] * inv
        shift = bn[1:2, :] - mean * scale
        h = z * scale + shift
        h = jnp.where(h > 0.0, h, _LEAKY_SLOPE * h)        # LeakyReLU(0.1)

        # Heads: one lane-dense matmul; cols [0,10)=disc, [10,12)=mu, [12,14)=var.
        y = jnp.dot(h, hw_ref[...], preferred_element_type=jnp.float32)
        y = y + hb_ref[...]
        col = jax.lax.broadcasted_iota(jnp.int32, y.shape, 1)
        y = jnp.where((col >= var_lo) & (col < var_hi), jnp.exp(y), y)
        out_ref[...] = y


def _qhead_pallas(a_bf16, w_bf16, bn_param, head_w, head_b, *, n_valid,
                  var_lo, var_hi, tk):
    m_pad, k_total = a_bf16.shape
    assert k_total % tk == 0, (k_total, tk)
    grid = (k_total // tk,)
    return pl.pallas_call(
        functools.partial(_qhead_kernel, n_valid=float(n_valid),
                          var_lo=var_lo, var_hi=var_hi),
        out_shape=jax.ShapeDtypeStruct((m_pad, _HEAD_PAD), jnp.float32),
        grid_spec=pltpu.PrefetchScalarGridSpec(
            num_scalar_prefetch=0,
            grid=grid,
            in_specs=[
                pl.BlockSpec((m_pad, tk), lambda k: (0, k)),        # A tile
                pl.BlockSpec((tk, _C1_OUT), lambda k: (k, 0)),      # W tile
                pl.BlockSpec((2, _C1_OUT), lambda k: (0, 0)),       # gamma/beta
                pl.BlockSpec((_C1_OUT, _HEAD_PAD), lambda k: (0, 0)),  # head W
                pl.BlockSpec((1, _HEAD_PAD), lambda k: (0, 0)),     # head bias
            ],
            out_specs=pl.BlockSpec((m_pad, _HEAD_PAD), lambda k: (0, 0)),
            scratch_shapes=[pltpu.VMEM((m_pad, _C1_OUT), jnp.float32)],
        ),
        compiler_params=pltpu.CompilerParams(
            dimension_semantics=("arbitrary",),
            vmem_limit_bytes=32 * 1024 * 1024),
    )(a_bf16, w_bf16, bn_param, head_w, head_b)


# ----------------------------------------------------------------------------
# Wrapper: layout glue only (reshape/pad/concat); all compute is in the kernel.
# ----------------------------------------------------------------------------
def qhead_forward(x, params):
    """x: (N, 1024, 4, 4) NCHW.  Returns (disc_logits (N,10), mu (N,2), var (N,2))."""
    w1, gamma, beta, wd, bd, wm, bm, wv, bv = params
    n, cin, h, w = x.shape
    cout = w1.shape[0]
    assert (cin, h, w) == (w1.shape[1], w1.shape[2], w1.shape[3])
    assert cout == _C1_OUT
    k_total = cin * h * w

    # im2col degenerates to a flatten (4x4 kernel covers the whole 4x4 input).
    a = x.reshape(n, k_total)
    m_pad = max(8, ((n + 7) // 8) * 8)
    if m_pad != n:
        a = jnp.pad(a, ((0, m_pad - n), (0, 0)))
    wmat = w1.reshape(cout, k_total).T                      # (K, 128)

    # Heads packed into one lane-dense (128, 128) matrix: [disc | mu | var | 0...].
    n_disc, n_mu, n_var = wd.shape[0], wm.shape[0], wv.shape[0]
    n_heads = n_disc + n_mu + n_var
    head_w = jnp.concatenate(
        [wd.reshape(n_disc, cout).T,
         wm.reshape(n_mu, cout).T,
         wv.reshape(n_var, cout).T], axis=1)
    head_w = jnp.pad(head_w, ((0, 0), (0, _HEAD_PAD - n_heads)))
    head_b = jnp.pad(jnp.concatenate([bd, bm, bv]),
                     (0, _HEAD_PAD - n_heads)).reshape(1, _HEAD_PAD)
    bn_param = jnp.stack([gamma, beta], axis=0)             # (2, 128)

    tk = min(k_total, 2048)
    out = _qhead_pallas(a.astype(jnp.bfloat16), wmat.astype(jnp.bfloat16),
                        bn_param, head_w.astype(jnp.float32),
                        head_b.astype(jnp.float32),
                        n_valid=n, var_lo=n_disc + n_mu, var_hi=n_heads, tk=tk)

    disc = out[:n, :n_disc]
    mu = out[:n, n_disc:n_disc + n_mu]
    var = out[:n, n_disc + n_mu:n_heads]
    # torch .squeeze() on (N, C, 1, 1) with N > 1 -> (N, C); matched here.
    return disc, mu, var


# ----------------------------------------------------------------------------
# Pure-JAX reference (same bf16 input rounding as the kernel) for validation.
# ----------------------------------------------------------------------------
def qhead_reference(x, params):
    w1, gamma, beta, wd, bd, wm, bm, wv, bv = params
    n = x.shape[0]
    a = x.reshape(n, -1).astype(jnp.bfloat16).astype(jnp.float32)
    wm1 = w1.reshape(_C1_OUT, -1).T.astype(jnp.bfloat16).astype(jnp.float32)
    z = a @ wm1
    mean = z.mean(axis=0)
    var = z.var(axis=0)                                     # biased
    h = (z - mean) / jnp.sqrt(var + _EPS) * gamma + beta
    h = jnp.where(h > 0.0, h, _LEAKY_SLOPE * h)
    disc = h @ wd.reshape(wd.shape[0], _C1_OUT).T + bd
    mu = h @ wm.reshape(wm.shape[0], _C1_OUT).T + bm
    v = jnp.exp(h @ wv.reshape(wv.shape[0], _C1_OUT).T + bv)
    return disc, mu, v


def init_params(key):
    ks = jax.random.split(key, 7)
    w1 = jax.random.normal(ks[0], (_C1_OUT, 1024, 4, 4), jnp.float32) * 0.02
    gamma = jnp.ones((_C1_OUT,), jnp.float32)               # BatchNorm2d defaults
    beta = jnp.zeros((_C1_OUT,), jnp.float32)
    wd = jax.random.normal(ks[1], (10, _C1_OUT, 1, 1), jnp.float32) * 0.02
    bd = jax.random.normal(ks[2], (10,), jnp.float32) * 0.02
    wm = jax.random.normal(ks[3], (2, _C1_OUT, 1, 1), jnp.float32) * 0.02
    bm = jax.random.normal(ks[4], (2,), jnp.float32) * 0.02
    wv = jax.random.normal(ks[5], (2, _C1_OUT, 1, 1), jnp.float32) * 0.02
    bv = jax.random.normal(ks[6], (2,), jnp.float32) * 0.02
    return (w1, gamma, beta, wd, bd, wm, bm, wv, bv)


if __name__ == "__main__":
    key = jax.random.PRNGKey(0)
    kx, kp = jax.random.split(key)
    # QHead expects discriminator features: (N, 1024, 4, 4).
    x = jax.random.normal(kx, (2, 1024, 4, 4), jnp.float32)
    params = init_params(kp)

    fwd = jax.jit(qhead_forward)
    disc, mu, var = jax.block_until_ready(fwd(x, params))

    assert disc.shape == (2, 10), disc.shape
    assert mu.shape == (2, 2), mu.shape
    assert var.shape == (2, 2), var.shape
    assert bool(jnp.all(jnp.isfinite(disc)))
    assert bool(jnp.all(jnp.isfinite(mu)))
    assert bool(jnp.all(jnp.isfinite(var)))
    assert bool(jnp.all(var > 0.0))                         # exp output

    # Validate against the pure-JAX reference (same bf16 input rounding).
    rd, rm, rv = jax.jit(qhead_reference)(x, params)
    assert bool(jnp.allclose(disc, rd, rtol=2e-2, atol=2e-2))
    assert bool(jnp.allclose(mu, rm, rtol=2e-2, atol=2e-2))
    assert bool(jnp.allclose(var, rv, rtol=2e-2, atol=2e-2))

    print("KERNEL_OK")
</pallas_src>

<mosaic_0001>
module attributes {stable_mosaic.version = 11 : i64} {
  func.func @_qhead_kernel(%arg0: i32, %arg1: memref<8x2048xbf16, #tpu.memory_space<vmem>>, %arg2: memref<2048x128xbf16, #tpu.memory_space<vmem>>, %arg3: memref<2x128xf32, #tpu.memory_space<vmem>>, %arg4: memref<128x128xf32, #tpu.memory_space<vmem>>, %arg5: memref<1x128xf32, #tpu.memory_space<vmem>>, %arg6: memref<8x128xf32, #tpu.memory_space<vmem>>, %arg7: memref<8x128xf32, #tpu.memory_space<vmem>>) attributes {dimension_semantics = [#tpu.dimension_semantics<arbitrary>], iteration_bounds = array<i64: 8>, scalar_prefetch = 0 : i64, scratch_operands = 1 : i64, tpu.core_type = #tpu.core_type<tc>, window_params = [{transform_indices = @transform_0, window_bounds = array<i64: 8, 2048>}, {transform_indices = @transform_1, window_bounds = array<i64: 2048, 128>}, {pipeline_mode = #tpu.pipeline_mode<synchronous>, transform_indices = @transform_2, window_bounds = array<i64: 2, 128>}, {pipeline_mode = #tpu.pipeline_mode<synchronous>, transform_indices = @transform_3, window_bounds = array<i64: 128, 128>}, {pipeline_mode = #tpu.pipeline_mode<synchronous>, transform_indices = @transform_4, window_bounds = array<i64: 1, 128>}, {pipeline_mode = #tpu.pipeline_mode<synchronous>, transform_indices = @transform_5, window_bounds = array<i64: 8, 128>}]} {
    %c0_i32 = arith.constant 0 : i32
    %0 = arith.cmpi eq, %arg0, %c0_i32 : i32
    %1 = arith.extui %0 : i1 to i32
    %c0_i32_0 = arith.constant 0 : i32
    %2 = arith.cmpi ne, %1, %c0_i32_0 : i32
    scf.if %2 {
      %cst_9 = arith.constant 0.000000e+00 : f32
      %12 = vector.broadcast %cst_9 : f32 to vector<8x128xf32>
      %c0_10 = arith.constant 0 : index
      %c0_11 = arith.constant 0 : index
      %13 = vector.load %arg7[%c0_10, %c0_11] : memref<8x128xf32, #tpu.memory_space<vmem>>, vector<8x128xf32>
      tpu.vector_store %arg7[%c0_10, %c0_11], %12 {strides = array<i32>} : memref<8x128xf32, #tpu.memory_space<vmem>>, vector<8x128xf32>,
    } else {
    }
    %c0 = arith.constant 0 : index
    %c0_1 = arith.constant 0 : index
    %3 = vector.load %arg7[%c0, %c0_1] : memref<8x128xf32, #tpu.memory_space<vmem>>, vector<8x128xf32>
    %c0_2 = arith.constant 0 : index
    %c0_3 = arith.constant 0 : index
    %4 = vector.load %arg1[%c0_2, %c0_3] : memref<8x2048xbf16, #tpu.memory_space<vmem>>, vector<8x2048xbf16>
    %c0_4 = arith.constant 0 : index
    %c0_5 = arith.constant 0 : index
    %5 = vector.load %arg2[%c0_4, %c0_5] : memref<2048x128xbf16, #tpu.memory_space<vmem>>, vector<2048x128xbf16>
    %cst = arith.constant dense<0.000000e+00> : vector<8x128xf32>
    %6 = tpu.matmul %4, %5, %cst {dimension_numbers = #tpu.dot_dimension_numbers<[1], [0], [0], [1], [0, 0, 1, 1], [], []>} : vector<8x2048xbf16>, vector<2048x128xbf16>, vector<8x128xf32> -> vector<8x128xf32>
    %7 = arith.addf %3, %6 : vector<8x128xf32>
    %c0_6 = arith.constant 0 : index
    %c0_7 = arith.constant 0 : index
    %8 = vector.load %arg7[%c0_6, %c0_7] : memref<8x128xf32, #tpu.memory_space<vmem>>, vector<8x128xf32>
    tpu.vector_store %arg7[%c0_6, %c0_7], %7 {strides = array<i32>} : memref<8x128xf32, #tpu.memory_space<vmem>>, vector<8x128xf32>,
    %c7_i32 = arith.constant 7 : i32
    %9 = arith.cmpi eq, %arg0, %c7_i32 : i32
    %10 = arith.extui %9 : i1 to i32
    %c0_i32_8 = arith.constant 0 : i32
    %11 = arith.cmpi ne, %10, %c0_i32_8 : i32
    scf.if %11 {
      %c0_9 = arith.constant 0 : index
      %c0_10 = arith.constant 0 : index
      %12 = vector.load %arg7[%c0_9, %c0_10] : memref<8x128xf32, #tpu.memory_space<vmem>>, vector<8x128xf32>
      %cst_11 = arith.constant dense<0.000000e+00> : vector<128xf32>
      %13 = vector.multi_reduction <add>, %12, %cst_11 [0] : vector<8x128xf32> to vector<128xf32>
      %14 = vector.shape_cast %13 : vector<128xf32> to vector<1x128xf32>
      %cst_12 = arith.constant 5.000000e-01 : f32
      %15 = vector.broadcast %cst_12 : f32 to vector<1x128xf32>
      %16 = arith.mulf %14, %15 : vector<1x128xf32>
      %17 = arith.mulf %12, %12 : vector<8x128xf32>
      %cst_13 = arith.constant dense<0.000000e+00> : vector<128xf32>
      %18 = vector.multi_reduction <add>, %17, %cst_13 [0] : vector<8x128xf32> to vector<128xf32>
      %19 = vector.shape_cast %18 : vector<128xf32> to vector<1x128xf32>
      %cst_14 = arith.constant 5.000000e-01 : f32
      %20 = vector.broadcast %cst_14 : f32 to vector<1x128xf32>
      %21 = arith.mulf %19, %20 : vector<1x128xf32>
      %22 = arith.mulf %16, %16 : vector<1x128xf32>
      %23 = arith.subf %21, %22 : vector<1x128xf32>
      %cst_15 = arith.constant 0.000000e+00 : f32
      %24 = vector.broadcast %cst_15 : f32 to vector<1x128xf32>
      %25 = arith.maximumf %23, %24 : vector<1x128xf32>
      %cst_16 = arith.constant 9.99999974E-6 : f32
      %26 = vector.broadcast %cst_16 : f32 to vector<1x128xf32>
      %27 = arith.addf %25, %26 : vector<1x128xf32>
      %28 = math.rsqrt %27 : vector<1x128xf32>
      %c0_17 = arith.constant 0 : index
      %c0_18 = arith.constant 0 : index
      %29 = vector.load %arg3[%c0_17, %c0_18] : memref<2x128xf32, #tpu.memory_space<vmem>>, vector<2x128xf32>
      %30 = vector.extract_strided_slice %29 {offsets = [0, 0], sizes = [1, 128], strides = [1, 1]} : vector<2x128xf32> to vector<1x128xf32>
      %31 = arith.mulf %30, %28 : vector<1x128xf32>
      %32 = vector.extract_strided_slice %29 {offsets = [1, 0], sizes = [1, 128], strides = [1, 1]} : vector<2x128xf32> to vector<1x128xf32>
      %33 = arith.mulf %16, %31 : vector<1x128xf32>
      %34 = arith.subf %32, %33 : vector<1x128xf32>
      %35 = vector.broadcast %31 : vector<1x128xf32> to vector<8x128xf32>
      %36 = arith.mulf %12, %35 : vector<8x128xf32>
      %37 = vector.broadcast %34 : vector<1x128xf32> to vector<8x128xf32>
      %38 = arith.addf %36, %37 : vector<8x128xf32>
      %cst_19 = arith.constant 0.000000e+00 : f32
      %39 = vector.broadcast %cst_19 : f32 to vector<8x128xf32>
      %40 = arith.cmpf ogt, %38, %39 : vector<8x128xf32>
      %cst_20 = arith.constant 1.000000e-01 : f32
      %41 = vector.broadcast %cst_20 : f32 to vector<8x128xf32>
      %42 = arith.mulf %41, %38 : vector<8x128xf32>
      %43 = arith.select %40, %38, %42 : vector<8x128xi1>, vector<8x128xf32>
      %c0_21 = arith.constant 0 : index
      %c0_22 = arith.constant 0 : index
      %44 = vector.load %arg4[%c0_21, %c0_22] : memref<128x128xf32, #tpu.memory_space<vmem>>, vector<128x128xf32>
      %cst_23 = arith.constant dense<0.000000e+00> : vector<8x128xf32>
      %45 = tpu.matmul %43, %44, %cst_23 {dimension_numbers = #tpu.dot_dimension_numbers<[1], [0], [0], [1], [0, 0, 1, 1], [], []>} : vector<8x128xf32>, vector<128x128xf32>, vector<8x128xf32> -> vector<8x128xf32>
      %c0_24 = arith.constant 0 : index
      %c0_25 = arith.constant 0 : index
      %46 = vector.load %arg5[%c0_24, %c0_25] : memref<1x128xf32, #tpu.memory_space<vmem>>, vector<1x128xf32>
      %47 = vector.broadcast %46 : vector<1x128xf32> to vector<8x128xf32>
      %48 = arith.addf %45, %47 : vector<8x128xf32>
      %49 = tpu.iota {dimensions = array<i32: 1>} : vector<8x128xi32>
      %c12_i32 = arith.constant 12 : i32
      %50 = vector.broadcast %c12_i32 : i32 to vector<8x128xi32>
      %51 = arith.cmpi sge, %49, %50 : vector<8x128xi32>
      %c14_i32 = arith.constant 14 : i32
      %52 = vector.broadcast %c14_i32 : i32 to vector<8x128xi32>
      %53 = arith.cmpi slt, %49, %52 : vector<8x128xi32>
      %54 = arith.andi %51, %53 : vector<8x128xi1>
      %55 = math.exp %48 : vector<8x128xf32>
      %56 = arith.select %54, %55, %48 : vector<8x128xi1>, vector<8x128xf32>
      %c0_26 = arith.constant 0 : index
      %c0_27 = arith.constant 0 : index
      %57 = vector.load %arg6[%c0_26, %c0_27] : memref<8x128xf32, #tpu.memory_space<vmem>>, vector<8x128xf32>
      tpu.vector_store %arg6[%c0_26, %c0_27], %56 {strides = array<i32>} : memref<8x128xf32, #tpu.memory_space<vmem>>, vector<8x128xf32>,
    } else {
    }
    return
  }
  func.func @transform_0(%arg0: i32) -> (i32, i32) {
    %c0_i32 = arith.constant 0 : i32
    %c0_i32_0 = arith.constant 0 : i32
    return %c0_i32, %arg0 : i32, i32
  }
  func.func @transform_1(%arg0: i32) -> (i32, i32) {
    %c0_i32 = arith.constant 0 : i32
    %c0_i32_0 = arith.constant 0 : i32
    return %arg0, %c0_i32 : i32, i32
  }
  func.func @transform_2(%arg0: i32) -> (i32, i32) {
    %c0_i32 = arith.constant 0 : i32
    %c0_i32_0 = arith.constant 0 : i32
    %c0_i32_1 = arith.constant 0 : i32
    return %c0_i32, %c0_i32_0 : i32, i32
  }
  func.func @transform_3(%arg0: i32) -> (i32, i32) {
    %c0_i32 = arith.constant 0 : i32
    %c0_i32_0 = arith.constant 0 : i32
    %c0_i32_1 = arith.constant 0 : i32
    return %c0_i32, %c0_i32_0 : i32, i32
  }
  func.func @transform_4(%arg0: i32) -> (i32, i32) {
    %c0_i32 = arith.constant 0 : i32
    %c0_i32_0 = arith.constant 0 : i32
    %c0_i32_1 = arith.constant 0 : i32
    return %c0_i32, %c0_i32_0 : i32, i32
  }
  func.func @transform_5(%arg0: i32) -> (i32, i32) {
    %c0_i32 = arith.constant 0 : i32
    %c0_i32_0 = arith.constant 0 : i32
    %c0_i32_1 = arith.constant 0 : i32
    return %c0_i32, %c0_i32_0 : i32, i32
  }
}

</mosaic_0001>

<llo_original>
// kernel: qhead_forward.1
$region0: #{qhead_forward.1}
  #allocation0 [shape = 'u32[]', space=smem, size = 0x4, offset = 0x4, fixed_abs, tag = 'smem constant byte address 0x4 - core index']
  #allocation1 [shape = 'u32[144,128]{1,0:T(1,128)}', space=vmem, size = 0x12000, scoped, tag = 'internal scratch']
  #allocation2 [shape = 'f32[8,128]{1,0:T(8,128)}', space=vmem, size = 0x1000, scoped, tag = 'scratch operand']
  %s0 = inlined_call_operand.vmem [shape: bf16[8,16384], index: 0, kind: input, shape index: {}]
  %s1 = inlined_call_operand.vmem [shape: bf16[16384,128], index: 1, kind: input, shape index: {}]
  %s2 = inlined_call_operand.vmem [shape: f32[2,128], index: 2, kind: input, shape index: {}]
  %s3 = inlined_call_operand.vmem [shape: f32[128,128], index: 3, kind: input, shape index: {}]
  %s4 = inlined_call_operand.vmem [shape: f32[1,128], index: 4, kind: input, shape index: {}]
  %s5 = inlined_call_operand.vmem [shape: f32[8,128], index: 5, kind: output, shape index: {}]
  %s6 = sld [smem:[#allocation0]]
  $region61: #{qhead_forward.1} parent=0
    _
  %s8 = ssub.s32 1, %s6
  %s9 = scalar_select 0, %s8, %s6
  loop: start=0, step=1, limit=10
  $region2: #{qhead_forward.1} parent=0 // loop_pre_header
    _
  $region3: #{qhead_forward.1} parent=0 // loop_header
    %s11 = sphi 0, %s15
    %p12 = scmp.ge.s32.totalorder %s11, 10
    %s21 = sphi 0, %s23
    %s24 = sphi 0, %s21
    %s25 = sphi 0, %s24
    %s41 = sphi 0, %s25
    %s47 = sphi 0, %s49
    %s50 = sphi 0, %s47
    %s51 = sphi 0, %s50
    %s67 = sphi 0, %s51
    %s71 = sphi 0, %s71
    %s73 = sphi 0, %s71
    %s74 = sphi 0, %s73
    %s88 = sphi 0, %s74
    %s92 = sphi 0, %s92
    %s94 = sphi 0, %s92
    %s95 = sphi 0, %s94
    %s109 = sphi 0, %s95
    %s113 = sphi 0, %s113
    %s115 = sphi 0, %s113
    %s116 = sphi 0, %s115
    %s130 = sphi 0, %s116
    %s134 = sphi 0, %s134
    %s136 = sphi 0, %s134
    %s137 = sphi 0, %s136
    %s151 = sphi 0, %s137
  $region4: #{qhead_forward.1} parent=0 // loop_header_branch
    %14 = sbr.rel (%p12) target = $region8
  $region5: #{qhead_forward.1} parent=0 // loop_body
    %s16 = ssub.s32 %s11, 1
    %s17 = ssub.s32 %s11, 2
    %s18 = sadd.s32 %s11, 1
    %s19 = ssub.s32 %s11, %s18
    %p20 = scmp.eq.s32.totalorder %s19, 0
    %s22 = sadd.s32 %s21, 1
    %s23 = scalar_select %p20, %s21, %s22
    %p26 = pneg %p20
    %p27 = scmp.eq.s32.totalorder %s11, 7
    %p28 = por %p26, %p27
    %p29 = scmp.ne.s32.totalorder %s21, %s24
    %p30 = scmp.eq.s32.totalorder %s11, 0
    %p31 = por %p29, %p30
    %p32 = scmp.ne.s32.totalorder %s21, %s24
    %p33 = scmp.eq.s32.totalorder %s16, 7
    %p34 = por %p32, %p33
    %p35 = scmp.ne.s32.totalorder %s24, %s25
    %p36 = scmp.eq.s32.totalorder %s16, 0
    %p37 = por %p35, %p36
    %p38 = scmp.ne.s32.totalorder %s24, %s25
    %p39 = scmp.eq.s32.totalorder %s17, 7
    %p40 = por %p38, %p39
    %p42 = scmp.ne.s32.totalorder %s25, %s41
    %p43 = scmp.eq.s32.totalorder %s17, 0
    %p44 = por %p42, %p43
    %s45 = ssub.s32 %s11, %s18
    %p46 = scmp.eq.s32.totalorder %s45, 0
    %s48 = sadd.s32 %s47, 1
    %s49 = scalar_select %p46, %s47, %s48
    %p52 = pneg %p46
    %p53 = scmp.eq.s32.totalorder %s11, 7
    %p54 = por %p52, %p53
    %p55 = scmp.ne.s32.totalorder %s47, %s50
    %p56 = scmp.eq.s32.totalorder %s11, 0
    %p57 = por %p55, %p56
    %p58 = scmp.ne.s32.totalorder %s47, %s50
    %p59 = scmp.eq.s32.totalorder %s16, 7
    %p60 = por %p58, %p59
    %p61 = scmp.ne.s32.totalorder %s50, %s51
    %p62 = scmp.eq.s32.totalorder %s16, 0
    %p63 = por %p61, %p62
    %p64 = scmp.ne.s32.totalorder %s50, %s51
    %p65 = scmp.eq.s32.totalorder %s17, 7
    %p66 = por %p64, %p65
    %p68 = scmp.ne.s32.totalorder %s51, %s67
    %p69 = scmp.eq.s32.totalorder %s17, 0
    %p70 = por %p68, %p69
    %s72 = sadd.s32 %s71, 1
    %p75 = scmp.eq.s32.totalorder %s11, 7
    %p76 = scmp.ne.s32.totalorder %s71, %s73
    %p77 = scmp.eq.s32.totalorder %s11, 0
    %p78 = por %p76, %p77
    %p79 = scmp.ne.s32.totalorder %s71, %s73
    %p80 = scmp.eq.s32.totalorder %s16, 7
    %p81 = por %p79, %p80
    %p82 = scmp.ne.s32.totalorder %s73, %s74
    %p83 = scmp.eq.s32.totalorder %s16, 0
    %p84 = por %p82, %p83
    %p85 = scmp.ne.s32.totalorder %s73, %s74
    %p86 = scmp.eq.s32.totalorder %s17, 7
    %p87 = por %p85, %p86
    %p89 = scmp.ne.s32.totalorder %s74, %s88
    %p90 = scmp.eq.s32.totalorder %s17, 0
    %p91 = por %p89, %p90
    %s93 = sadd.s32 %s92, 1
    %p96 = scmp.eq.s32.totalorder %s11, 7
    %p97 = scmp.ne.s32.totalorder %s92, %s94
    %p98 = scmp.eq.s32.totalorder %s11, 0
    %p99 = por %p97, %p98
    %p100 = scmp.ne.s32.totalorder %s92, %s94
    %p101 = scmp.eq.s32.totalorder %s16, 7
    %p102 = por %p100, %p101
    %p103 = scmp.ne.s32.totalorder %s94, %s95
    %p104 = scmp.eq.s32.totalorder %s16, 0
    %p105 = por %p103, %p104
    %p106 = scmp.ne.s32.totalorder %s94, %s95
    %p107 = scmp.eq.s32.totalorder %s17, 7
    %p108 = por %p106, %p107
    %p110 = scmp.ne.s32.totalorder %s95, %s109
    %p111 = scmp.eq.s32.totalorder %s17, 0
    %p112 = por %p110, %p111
    %s114 = sadd.s32 %s113, 1
    %p117 = scmp.eq.s32.totalorder %s11, 7
    %p118 = scmp.ne.s32.totalorder %s113, %s115
    %p119 = scmp.eq.s32.totalorder %s11, 0
    %p120 = por %p118, %p119
    %p121 = scmp.ne.s32.totalorder %s113, %s115
    %p122 = scmp.eq.s32.totalorder %s16, 7
    %p123 = por %p121, %p122
    %p124 = scmp.ne.s32.totalorder %s115, %s116
    %p125 = scmp.eq.s32.totalorder %s16, 0
    %p126 = por %p124, %p125
    %p127 = scmp.ne.s32.totalorder %s115, %s116
    %p128 = scmp.eq.s32.totalorder %s17, 7
    %p129 = por %p127, %p128
    %p131 = scmp.ne.s32.totalorder %s116, %s130
    %p132 = scmp.eq.s32.totalorder %s17, 0
    %p133 = por %p131, %p132
    %s135 = sadd.s32 %s134, 1
    %p138 = scmp.eq.s32.totalorder %s11, 7
    %p139 = scmp.ne.s32.totalorder %s134, %s136
    %p140 = scmp.eq.s32.totalorder %s11, 0
    %p141 = por %p139, %p140
    %p142 = scmp.ne.s32.totalorder %s134, %s136
    %p143 = scmp.eq.s32.totalorder %s16, 7
    %p144 = por %p142, %p143
    %p145 = scmp.ne.s32.totalorder %s136, %s137
    %p146 = scmp.eq.s32.totalorder %s16, 0
    %p147 = por %p145, %p146
    %p148 = scmp.ne.s32.totalorder %s136, %s137
    %p149 = scmp.eq.s32.totalorder %s17, 7
    %p150 = por %p148, %p149
    %p152 = scmp.ne.s32.totalorder %s137, %s151
    %p153 = scmp.eq.s32.totalorder %s17, 0
    %p154 = por %p152, %p153
    %p155 = scmp.le.s32.totalorder 1, %s11
    %p156 = scmp.lt.s32.totalorder %s11, 9
    %p157 = pnand %p155, %p156
    %p158 = pneg %p157
    // Predicated region
    $region9: #{qhead_forward.1} parent=5 // pred_check
      _
    $region10: #{qhead_forward.1} parent=5 // pred_check_branch
      %160 = sbr.rel (%p157) target = $region12
    $region11: #{qhead_forward.1} parent=5 // pred_region
      %s161 = ssub.s32 %s11, 1
      // Predicated region
      $region13: #{qhead_forward.1} parent=11 // pred_check
        %p162 = pneg %p84
      $region14: #{qhead_forward.1} parent=11 // pred_check_branch
        %164 = sbr.rel (%p162) target = $region16
      $region15: #{qhead_forward.1} parent=11 // pred_region
        _
      $region16: #{qhead_forward.1} parent=11 // pred_fallthru
        _
      // Predicated region
      $region17: #{qhead_forward.1} parent=11 // pred_check
        %p165 = pneg %p105
      $region18: #{qhead_forward.1} parent=11 // pred_check_branch
        %167 = sbr.rel (%p165) target = $region20
      $region19: #{qhead_forward.1} parent=11 // pred_region
        _
      $region20: #{qhead_forward.1} parent=11 // pred_fallthru
        _
      // Predicated region
      $region21: #{qhead_forward.1} parent=11 // pred_check
        %p168 = pneg %p126
      $region22: #{qhead_forward.1} parent=11 // pred_check_branch
        %170 = sbr.rel (%p168) target = $region24
      $region23: #{qhead_forward.1} parent=11 // pred_region
        _
      $region24: #{qhead_forward.1} parent=11 // pred_fallthru
        _
    $region12: #{qhead_forward.1} parent=5 // pred_fallthru
      _
    %p171 = scmp.lt.s32.totalorder %s11, 8
    // Predicated region
    $region25: #{qhead_forward.1} parent=5 // pred_check
      %p172 = pneg %p171
    $region26: #{qhead_forward.1} parent=5 // pred_check_branch
      %174 = sbr.rel (%p172) target = $region28
    $region27: #{qhead_forward.1} parent=5 // pred_region
      // Predicated region
      $region29: #{qhead_forward.1} parent=27 // pred_check
        %p175 = pneg %p31
      $region30: #{qhead_forward.1} parent=27 // pred_check_branch
        %177 = sbr.rel (%p175) target = $region32
      $region31: #{qhead_forward.1} parent=27 // pred_region
        %s178 = smul.u32 16, %s11
        %p179 = scmp.lt.s32.totalorder %s178, 127
        %s180 = scalar_select %p179, %s178, 127
        %s181 = smul.addr %s180, 4
        %s182 = scalar_lea.vmem %s0, %s181
        %s183 = smul.u32 16, %s11
      $region32: #{qhead_forward.1} parent=27 // pred_fallthru
        _
      // Predicated region
      $region33: #{qhead_forward.1} parent=27 // pred_check
        %p184 = pneg %p57
      $region34: #{qhead_forward.1} parent=27 // pred_check_branch
        %186 = sbr.rel (%p184) target = $region36
      $region35: #{qhead_forward.1} parent=27 // pred_region
        %s187 = smul.u32 256, %s11
        %p188 = scmp.lt.s32.totalorder %s187, 2047
        %s189 = scalar_select %p188, %s187, 2047
        %s190 = smul.addr %s189, 4
        %s191 = scalar_lea.vmem %s1, %s190
        %s192 = smul.u32 256, %s11
      $region36: #{qhead_forward.1} parent=27 // pred_fallthru
        _
    $region28: #{qhead_forward.1} parent=5 // pred_fallthru
      _
    %p193 = scmp.le.s32.totalorder 1, %s11
    %p194 = scmp.lt.s32.totalorder %s11, 9
    %p195 = pnand %p193, %p194
    %p196 = pneg %p195
    // Predicated region
    $region37: #{qhead_forward.1} parent=5 // pred_check
      _
    $region38: #{qhead_forward.1} parent=5 // pred_check_branch
      %198 = sbr.rel (%p195) target = $region40
    $region39: #{qhead_forward.1} parent=5 // pred_region
      %s199 = ssub.s32 %s11, 1
      %s200 = smul.u32 16, %s16
      %p201 = scmp.lt.s32.totalorder %s200, 127
      %s202 = scalar_select %p201, %s200, 127
      %s203 = smul.addr %s202, 4
      %s204 = scalar_lea.vmem %s0, %s203
      %p205 = pneg %p37
      %p206 = pneg %p34
      %s207 = smul.u32 256, %s16
      %p208 = scmp.lt.s32.totalorder %s207, 2047
      %s209 = scalar_select %p208, %s207, 2047
      %s210 = smul.addr %s209, 4
      %s211 = scalar_lea.vmem %s1, %s210
      %p212 = pneg %p63
      %p213 = pneg %p60
      %p214 = pneg %p84
      %p215 = pneg %p81
      %p216 = pneg %p105
      %p217 = pneg %p102
      %p218 = pneg %p126
      %p219 = pneg %p123
      %p220 = pneg %p147
      %p221 = pneg %p144
      %s222 = smul.u32 16, %s16
      %p223 = scmp.lt.s32.totalorder %s222, 127
      %s224 = scalar_select %p223, %s222, 127
      %s225 = smul.addr %s224, 4
      %s226 = scalar_lea.vmem %s0, %s225
      %s227 = smul.u32 16, %s16
      %s228 = smul.u32 256, %s16
      %p229 = scmp.lt.s32.totalorder %s228, 2047
      %s230 = scalar_select %p229, %s228, 2047
      %s231 = smul.addr %s230, 4
      %s232 = scalar_lea.vmem %s1, %s231
      %s233 = smul.u32 256, %s16
      %p235 = scmp.eq.s32.totalorder %s16, 0
      // Predicated region
      $region41: #{qhead_forward.1} parent=39 // pred_check
        %p236 = pneg %p235
      $region42: #{qhead_forward.1} parent=39 // pred_check_branch
        %238 = sbr.rel (%p236) target = $region44
      $region43: #{qhead_forward.1} parent=39 // pred_region
        %239 = vst [vmem:[#allocation2] sm:$0xff] 0.0
      $region44: #{qhead_forward.1} parent=39 // pred_fallthru
        _
      %v240 = vld [vmem:[#allocation2] sm:$0xff]
      %v241 = vld [vmem:[%s226] sm:$0xff]
      %v242 = vld [vmem:[%s226 + $0x8] sm:$0xff]
      %v243 = vld [vmem:[%s226 + $0x10] sm:$0xff]
      %v244 = vld [vmem:[%s226 + $0x18] sm:$0xff]
      %v245 = vld [vmem:[%s226 + $0x20] sm:$0xff]
      %v246 = vld [vmem:[%s226 + $0x28] sm:$0xff]
      %v247 = vld [vmem:[%s226 + $0x30] sm:$0xff]
      %v248 = vld [vmem:[%s226 + $0x38] sm:$0xff]
      %v249 = vld [vmem:[%s232] sm:$0xf]
      %v250 = vld [vmem:[%s232 + $0x4] sm:$0xf]
      %v251 = vld [vmem:[%s232 + $0x8] sm:$0xf]
      %v252 = vld [vmem:[%s232 + $0xc] sm:$0xf]
      %v253 = vld [vmem:[%s232 + $0x10] sm:$0xf]
      %v254 = vld [vmem:[%s232 + $0x14] sm:$0xf]
      %v255 = vld [vmem:[%s232 + $0x18] sm:$0xf]
      %v256 = vld [vmem:[%s232 + $0x1c] sm:$0xf]
      %v257 = vld [vmem:[%s232 + $0x20] sm:$0xf]
      %v258 = vld [vmem:[%s232 + $0x24] sm:$0xf]
      %v259 = vld [vmem:[%s232 + $0x28] sm:$0xf]
      %v260 = vld [vmem:[%s232 + $0x2c] sm:$0xf]
      %v261 = vld [vmem:[%s232 + $0x30] sm:$0xf]
      %v262 = vld [vmem:[%s232 + $0x34] sm:$0xf]
      %v263 = vld [vmem:[%s232 + $0x38] sm:$0xf]
      %v264 = vld [vmem:[%s232 + $0x3c] sm:$0xf]
      %v265 = vld [vmem:[%s232 + $0x40] sm:$0xf]
      %v266 = vld [vmem:[%s232 + $0x44] sm:$0xf]
      %v267 = vld [vmem:[%s232 + $0x48] sm:$0xf]
      %v268 = vld [vmem:[%s232 + $0x4c] sm:$0xf]
      %v269 = vld [vmem:[%s232 + $0x50] sm:$0xf]
      %v270 = vld [vmem:[%s232 + $0x54] sm:$0xf]
      %v271 = vld [vmem:[%s232 + $0x58] sm:$0xf]
      %v272 = vld [vmem:[%s232 + $0x5c] sm:$0xf]
      %v273 = vld [vmem:[%s232 + $0x60] sm:$0xf]
      %v274 = vld [vmem:[%s232 + $0x64] sm:$0xf]
      %v275 = vld [vmem:[%s232 + $0x68] sm:$0xf]
      %v276 = vld [vmem:[%s232 + $0x6c] sm:$0xf]
      %v277 = vld [vmem:[%s232 + $0x70] sm:$0xf]
      %v278 = vld [vmem:[%s232 + $0x74] sm:$0xf]
      %v279 = vld [vmem:[%s232 + $0x78] sm:$0xf]
      %v280 = vld [vmem:[%s232 + $0x7c] sm:$0xf]
      %v281 = vld [vmem:[%s232 + $0x80] sm:$0xf]
      %v282 = vld [vmem:[%s232 + $0x84] sm:$0xf]
      %v283 = vld [vmem:[%s232 + $0x88] sm:$0xf]
      %v284 = vld [vmem:[%s232 + $0x8c] sm:$0xf]
      %v285 = vld [vmem:[%s232 + $0x90] sm:$0xf]
      %v286 = vld [vmem:[%s232 + $0x94] sm:$0xf]
      %v287 = vld [vmem:[%s232 + $0x98] sm:$0xf]
      %v288 = vld [vmem:[%s232 + $0x9c] sm:$0xf]
      %v289 = vld [vmem:[%s232 + $0xa0] sm:$0xf]
      %v290 = vld [vmem:[%s232 + $0xa4] sm:$0xf]
      %v291 = vld [vmem:[%s232 + $0xa8] sm:$0xf]
      %v292 = vld [vmem:[%s232 + $0xac] sm:$0xf]
      %v293 = vld [vmem:[%s232 + $0xb0] sm:$0xf]
      %v294 = vld [vmem:[%s232 + $0xb4] sm:$0xf]
      %v295 = vld [vmem:[%s232 + $0xb8] sm:$0xf]
      %v296 = vld [vmem:[%s232 + $0xbc] sm:$0xf]
      %v297 = vld [vmem:[%s232 + $0xc0] sm:$0xf]
      %v298 = vld [vmem:[%s232 + $0xc4] sm:$0xf]
      %v299 = vld [vmem:[%s232 + $0xc8] sm:$0xf]
      %v300 = vld [vmem:[%s232 + $0xcc] sm:$0xf]
      %v301 = vld [vmem:[%s232 + $0xd0] sm:$0xf]
      %v302 = vld [vmem:[%s232 + $0xd4] sm:$0xf]
      %v303 = vld [vmem:[%s232 + $0xd8] sm:$0xf]
      %v304 = vld [vmem:[%s232 + $0xdc] sm:$0xf]
      %v305 = vld [vmem:[%s232 + $0xe0] sm:$0xf]
      %v306 = vld [vmem:[%s232 + $0xe4] sm:$0xf]
      %v307 = vld [vmem:[%s232 + $0xe8] sm:$0xf]
      %v308 = vld [vmem:[%s232 + $0xec] sm:$0xf]
      %v309 = vld [vmem:[%s232 + $0xf0] sm:$0xf]
      %v310 = vld [vmem:[%s232 + $0xf4] sm:$0xf]
      %v311 = vld [vmem:[%s232 + $0xf8] sm:$0xf]
      %v312 = vld [vmem:[%s232 + $0xfc] sm:$0xf]
      %v313 = vld [vmem:[%s232 + $0x100] sm:$0xf]
      %v314 = vld [vmem:[%s232 + $0x104] sm:$0xf]
      %v315 = vld [vmem:[%s232 + $0x108] sm:$0xf]
      %v316 = vld [vmem:[%s232 + $0x10c] sm:$0xf]
      %v317 = vld [vmem:[%s232 + $0x110] sm:$0xf]
      %v318 = vld [vmem:[%s232 + $0x114] sm:$0xf]
      %v319 = vld [vmem:[%s232 + $0x118] sm:$0xf]
      %v320 = vld [vmem:[%s232 + $0x11c] sm:$0xf]
      %v321 = vld [vmem:[%s232 + $0x120] sm:$0xf]
      %v322 = vld [vmem:[%s232 + $0x124] sm:$0xf]
      %v323 = vld [vmem:[%s232 + $0x128] sm:$0xf]
      %v324 = vld [vmem:[%s232 + $0x12c] sm:$0xf]
      %v325 = vld [vmem:[%s232 + $0x130] sm:$0xf]
      %v326 = vld [vmem:[%s232 + $0x134] sm:$0xf]
      %v327 = vld [vmem:[%s232 + $0x138] sm:$0xf]
      %v328 = vld [vmem:[%s232 + $0x13c] sm:$0xf]
      %v329 = vld [vmem:[%s232 + $0x140] sm:$0xf]
      %v330 = vld [vmem:[%s232 + $0x144] sm:$0xf]
      %v331 = vld [vmem:[%s232 + $0x148] sm:$0xf]
      %v332 = vld [vmem:[%s232 + $0x14c] sm:$0xf]
      %v333 = vld [vmem:[%s232 + $0x150] sm:$0xf]
      %v334 = vld [vmem:[%s232 + $0x154] sm:$0xf]
      %v335 = vld [vmem:[%s232 + $0x158] sm:$0xf]
      %v336 = vld [vmem:[%s232 + $0x15c] sm:$0xf]
      %v337 = vld [vmem:[%s232 + $0x160] sm:$0xf]
      %v338 = vld [vmem:[%s232 + $0x164] sm:$0xf]
      %v339 = vld [vmem:[%s232 + $0x168] sm:$0xf]
      %v340 = vld [vmem:[%s232 + $0x16c] sm:$0xf]
      %v341 = vld [vmem:[%s232 + $0x170] sm:$0xf]
      %v342 = vld [vmem:[%s232 + $0x174] sm:$0xf]
      %v343 = vld [vmem:[%s232 + $0x178] sm:$0xf]
      %v344 = vld [vmem:[%s232 + $0x17c] sm:$0xf]
      %v345 = vld [vmem:[%s232 + $0x180] sm:$0xf]
      %v346 = vld [vmem:[%s232 + $0x184] sm:$0xf]
      %v347 = vld [vmem:[%s232 + $0x188] sm:$0xf]
      %v348 = vld [vmem:[%s232 + $0x18c] sm:$0xf]
      %v349 = vld [vmem:[%s232 + $0x190] sm:$0xf]
      %v350 = vld [vmem:[%s232 + $0x194] sm:$0xf]
      %v351 = vld [vmem:[%s232 + $0x198] sm:$0xf]
      %v352 = vld [vmem:[%s232 + $0x19c] sm:$0xf]
      %v353 = vld [vmem:[%s232 + $0x1a0] sm:$0xf]
      %v354 = vld [vmem:[%s232 + $0x1a4] sm:$0xf]
      %v355 = vld [vmem:[%s232 + $0x1a8] sm:$0xf]
      %v356 = vld [vmem:[%s232 + $0x1ac] sm:$0xf]
      %v357 = vld [vmem:[%s232 + $0x1b0] sm:$0xf]
      %v358 = vld [vmem:[%s232 + $0x1b4] sm:$0xf]
      %v359 = vld [vmem:[%s232 + $0x1b8] sm:$0xf]
      %v360 = vld [vmem:[%s232 + $0x1bc] sm:$0xf]
      %v361 = vld [vmem:[%s232 + $0x1c0] sm:$0xf]
      %v362 = vld [vmem:[%s232 + $0x1c4] sm:$0xf]
      %v363 = vld [vmem:[%s232 + $0x1c8] sm:$0xf]
      %v364 = vld [vmem:[%s232 + $0x1cc] sm:$0xf]
      %v365 = vld [vmem:[%s232 + $0x1d0] sm:$0xf]
      %v366 = vld [vmem:[%s232 + $0x1d4] sm:$0xf]
      %v367 = vld [vmem:[%s232 + $0x1d8] sm:$0xf]
      %v368 = vld [vmem:[%s232 + $0x1dc] sm:$0xf]
      %v369 = vld [vmem:[%s232 + $0x1e0] sm:$0xf]
      %v370 = vld [vmem:[%s232 + $0x1e4] sm:$0xf]
      %v371 = vld [vmem:[%s232 + $0x1e8] sm:$0xf]
      %v372 = vld [vmem:[%s232 + $0x1ec] sm:$0xf]
      %v373 = vld [vmem:[%s232 + $0x1f0] sm:$0xf]
      %v374 = vld [vmem:[%s232 + $0x1f4] sm:$0xf]
      %v375 = vld [vmem:[%s232 + $0x1f8] sm:$0xf]
      %v376 = vld [vmem:[%s232 + $0x1fc] sm:$0xf]
      %v377 = vld [vmem:[%s232 + $0x200] sm:$0xf]
      %v378 = vld [vmem:[%s232 + $0x204] sm:$0xf]
      %v379 = vld [vmem:[%s232 + $0x208] sm:$0xf]
      %v380 = vld [vmem:[%s232 + $0x20c] sm:$0xf]
      %v381 = vld [vmem:[%s232 + $0x210] sm:$0xf]
      %v382 = vld [vmem:[%s232 + $0x214] sm:$0xf]
      %v383 = vld [vmem:[%s232 + $0x218] sm:$0xf]
      %v384 = vld [vmem:[%s232 + $0x21c] sm:$0xf]
      %v385 = vld [vmem:[%s232 + $0x220] sm:$0xf]
      %v386 = vld [vmem:[%s232 + $0x224] sm:$0xf]
      %v387 = vld [vmem:[%s232 + $0x228] sm:$0xf]
      %v388 = vld [vmem:[%s232 + $0x22c] sm:$0xf]
      %v389 = vld [vmem:[%s232 + $0x230] sm:$0xf]
      %v390 = vld [vmem:[%s232 + $0x234] sm:$0xf]
      %v391 = vld [vmem:[%s232 + $0x238] sm:$0xf]
      %v392 = vld [vmem:[%s232 + $0x23c] sm:$0xf]
      %v393 = vld [vmem:[%s232 + $0x240] sm:$0xf]
      %v394 = vld [vmem:[%s232 + $0x244] sm:$0xf]
      %v395 = vld [vmem:[%s232 + $0x248] sm:$0xf]
      %v396 = vld [vmem:[%s232 + $0x24c] sm:$0xf]
      %v397 = vld [vmem:[%s232 + $0x250] sm:$0xf]
      %v398 = vld [vmem:[%s232 + $0x254] sm:$0xf]
      %v399 = vld [vmem:[%s232 + $0x258] sm:$0xf]
      %v400 = vld [vmem:[%s232 + $0x25c] sm:$0xf]
      %v401 = vld [vmem:[%s232 + $0x260] sm:$0xf]
      %v402 = vld [vmem:[%s232 + $0x264] sm:$0xf]
      %v403 = vld [vmem:[%s232 + $0x268] sm:$0xf]
      %v404 = vld [vmem:[%s232 + $0x26c] sm:$0xf]
      %v405 = vld [vmem:[%s232 + $0x270] sm:$0xf]
      %v406 = vld [vmem:[%s232 + $0x274] sm:$0xf]
      %v407 = vld [vmem:[%s232 + $0x278] sm:$0xf]
      %v408 = vld [vmem:[%s232 + $0x27c] sm:$0xf]
      %v409 = vld [vmem:[%s232 + $0x280] sm:$0xf]
      %v410 = vld [vmem:[%s232 + $0x284] sm:$0xf]
      %v411 = vld [vmem:[%s232 + $0x288] sm:$0xf]
      %v412 = vld [vmem:[%s232 + $0x28c] sm:$0xf]
      %v413 = vld [vmem:[%s232 + $0x290] sm:$0xf]
      %v414 = vld [vmem:[%s232 + $0x294] sm:$0xf]
      %v415 = vld [vmem:[%s232 + $0x298] sm:$0xf]
      %v416 = vld [vmem:[%s232 + $0x29c] sm:$0xf]
      %v417 = vld [vmem:[%s232 + $0x2a0] sm:$0xf]
      %v418 = vld [vmem:[%s232 + $0x2a4] sm:$0xf]
      %v419 = vld [vmem:[%s232 + $0x2a8] sm:$0xf]
      %v420 = vld [vmem:[%s232 + $0x2ac] sm:$0xf]
      %v421 = vld [vmem:[%s232 + $0x2b0] sm:$0xf]
      %v422 = vld [vmem:[%s232 + $0x2b4] sm:$0xf]
      %v423 = vld [vmem:[%s232 + $0x2b8] sm:$0xf]
      %v424 = vld [vmem:[%s232 + $0x2bc] sm:$0xf]
      %v425 = vld [vmem:[%s232 + $0x2c0] sm:$0xf]
      %v426 = vld [vmem:[%s232 + $0x2c4] sm:$0xf]
      %v427 = vld [vmem:[%s232 + $0x2c8] sm:$0xf]
      %v428 = vld [vmem:[%s232 + $0x2cc] sm:$0xf]
      %v429 = vld [vmem:[%s232 + $0x2d0] sm:$0xf]
      %v430 = vld [vmem:[%s232 + $0x2d4] sm:$0xf]
      %v431 = vld [vmem:[%s232 + $0x2d8] sm:$0xf]
      %v432 = vld [vmem:[%s232 + $0x2dc] sm:$0xf]
      %v433 = vld [vmem:[%s232 + $0x2e0] sm:$0xf]
      %v434 = vld [vmem:[%s232 + $0x2e4] sm:$0xf]
      %v435 = vld [vmem:[%s232 + $0x2e8] sm:$0xf]
      %v436 = vld [vmem:[%s232 + $0x2ec] sm:$0xf]
      %v437 = vld [vmem:[%s232 + $0x2f0] sm:$0xf]
      %v438 = vld [vmem:[%s232 + $0x2f4] sm:$0xf]
      %v439 = vld [vmem:[%s232 + $0x2f8] sm:$0xf]
      %v440 = vld [vmem:[%s232 + $0x2fc] sm:$0xf]
      %v441 = vld [vmem:[%s232 + $0x300] sm:$0xf]
      %v442 = vld [vmem:[%s232 + $0x304] sm:$0xf]
      %v443 = vld [vmem:[%s232 + $0x308] sm:$0xf]
      %v444 = vld [vmem:[%s232 + $0x30c] sm:$0xf]
      %v445 = vld [vmem:[%s232 + $0x310] sm:$0xf]
      %v446 = vld [vmem:[%s232 + $0x314] sm:$0xf]
      %v447 = vld [vmem:[%s232 + $0x318] sm:$0xf]
      %v448 = vld [vmem:[%s232 + $0x31c] sm:$0xf]
      %v449 = vld [vmem:[%s232 + $0x320] sm:$0xf]
      %v450 = vld [vmem:[%s232 + $0x324] sm:$0xf]
      %v451 = vld [vmem:[%s232 + $0x328] sm:$0xf]
      %v452 = vld [vmem:[%s232 + $0x32c] sm:$0xf]
      %v453 = vld [vmem:[%s232 + $0x330] sm:$0xf]
      %v454 = vld [vmem:[%s232 + $0x334] sm:$0xf]
      %v455 = vld [vmem:[%s232 + $0x338] sm:$0xf]
      %v456 = vld [vmem:[%s232 + $0x33c] sm:$0xf]
      %v457 = vld [vmem:[%s232 + $0x340] sm:$0xf]
      %v458 = vld [vmem:[%s232 + $0x344] sm:$0xf]
      %v459 = vld [vmem:[%s232 + $0x348] sm:$0xf]
      %v460 = vld [vmem:[%s232 + $0x34c] sm:$0xf]
      %v461 = vld [vmem:[%s232 + $0x350] sm:$0xf]
      %v462 = vld [vmem:[%s232 + $0x354] sm:$0xf]
      %v463 = vld [vmem:[%s232 + $0x358] sm:$0xf]
      %v464 = vld [vmem:[%s232 + $0x35c] sm:$0xf]
      %v465 = vld [vmem:[%s232 + $0x360] sm:$0xf]
      %v466 = vld [vmem:[%s232 + $0x364] sm:$0xf]
      %v467 = vld [vmem:[%s232 + $0x368] sm:$0xf]
      %v468 = vld [vmem:[%s232 + $0x36c] sm:$0xf]
      %v469 = vld [vmem:[%s232 + $0x370] sm:$0xf]
      %v470 = vld [vmem:[%s232 + $0x374] sm:$0xf]
      %v471 = vld [vmem:[%s232 + $0x378] sm:$0xf]
      %v472 = vld [vmem:[%s232 + $0x37c] sm:$0xf]
      %v473 = vld [vmem:[%s232 + $0x380] sm:$0xf]
      %v474 = vld [vmem:[%s232 + $0x384] sm:$0xf]
      %v475 = vld [vmem:[%s232 + $0x388] sm:$0xf]
      %v476 = vld [vmem:[%s232 + $0x38c] sm:$0xf]
      %v477 = vld [vmem:[%s232 + $0x390] sm:$0xf]
      %v478 = vld [vmem:[%s232 + $0x394] sm:$0xf]
      %v479 = vld [vmem:[%s232 + $0x398] sm:$0xf]
      %v480 = vld [vmem:[%s232 + $0x39c] sm:$0xf]
      %v481 = vld [vmem:[%s232 + $0x3a0] sm:$0xf]
      %v482 = vld [vmem:[%s232 + $0x3a4] sm:$0xf]
      %v483 = vld [vmem:[%s232 + $0x3a8] sm:$0xf]
      %v484 = vld [vmem:[%s232 + $0x3ac] sm:$0xf]
      %v485 = vld [vmem:[%s232 + $0x3b0] sm:$0xf]
      %v486 = vld [vmem:[%s232 + $0x3b4] sm:$0xf]
      %v487 = vld [vmem:[%s232 + $0x3b8] sm:$0xf]
      %v488 = vld [vmem:[%s232 + $0x3bc] sm:$0xf]
      %v489 = vld [vmem:[%s232 + $0x3c0] sm:$0xf]
      %v490 = vld [vmem:[%s232 + $0x3c4] sm:$0xf]
      %v491 = vld [vmem:[%s232 + $0x3c8] sm:$0xf]
      %v492 = vld [vmem:[%s232 + $0x3cc] sm:$0xf]
      %v493 = vld [vmem:[%s232 + $0x3d0] sm:$0xf]
      %v494 = vld [vmem:[%s232 + $0x3d4] sm:$0xf]
      %v495 = vld [vmem:[%s232 + $0x3d8] sm:$0xf]
      %v496 = vld [vmem:[%s232 + $0x3dc] sm:$0xf]
      %v497 = vld [vmem:[%s232 + $0x3e0] sm:$0xf]
      %v498 = vld [vmem:[%s232 + $0x3e4] sm:$0xf]
      %v499 = vld [vmem:[%s232 + $0x3e8] sm:$0xf]
      %v500 = vld [vmem:[%s232 + $0x3ec] sm:$0xf]
      %v501 = vld [vmem:[%s232 + $0x3f0] sm:$0xf]
      %v502 = vld [vmem:[%s232 + $0x3f4] sm:$0xf]
      %v503 = vld [vmem:[%s232 + $0x3f8] sm:$0xf]
      %v504 = vld [vmem:[%s232 + $0x3fc] sm:$0xf]
      %v513 = vunpack.c.l.b16 %v241
      %v514 = vunpack.c.h.b16 %v241
      %v515 = vunpack.c.l.b16 %v242
      %v516 = vunpack.c.h.b16 %v242
      %v517 = vunpack.c.l.b16 %v243
      %v518 = vunpack.c.h.b16 %v243
      %v519 = vunpack.c.l.b16 %v244
      %v520 = vunpack.c.h.b16 %v244
      %v521 = vunpack.c.l.b16 %v245
      %v522 = vunpack.c.h.b16 %v245
      %v523 = vunpack.c.l.b16 %v246
      %v524 = vunpack.c.h.b16 %v246
      %v525 = vunpack.c.l.b16 %v247
      %v526 = vunpack.c.h.b16 %v247
      %v527 = vunpack.c.l.b16 %v248
      %v528 = vunpack.c.h.b16 %v248
      %v529 = vpack.c.b16 %v513, %v513
      %v530 = vpack.c.b16 %v514, %v514
      %v531 = vpack.c.b16 %v515, %v515
      %v532 = vpack.c.b16 %v516, %v516
      %v533 = vpack.c.b16 %v517, %v517
      %v534 = vpack.c.b16 %v518, %v518
      %v535 = vpack.c.b16 %v519, %v519
      %v536 = vpack.c.b16 %v520, %v520
      %v537 = vpack.c.b16 %v521, %v521
      %v538 = vpack.c.b16 %v522, %v522
      %v539 = vpack.c.b16 %v523, %v523
      %v540 = vpack.c.b16 %v524, %v524
      %v541 = vpack.c.b16 %v525, %v525
      %v542 = vpack.c.b16 %v526, %v526
      %v543 = vpack.c.b16 %v527, %v527
      %v544 = vpack.c.b16 %v528, %v528
      %v817 = vunpack.c.l.b16 %v249
      %v818 = vunpack.c.l.b16 %v250
      %v819 = vunpack.c.l.b16 %v251
      %v820 = vunpack.c.l.b16 %v252
      %v821 = vunpack.c.l.b16 %v253
      %v822 = vunpack.c.l.b16 %v254
      %v823 = vunpack.c.l.b16 %v255
      %v824 = vunpack.c.l.b16 %v256
      %v825 = vunpack.c.l.b16 %v257
      %v826 = vunpack.c.l.b16 %v258
      %v827 = vunpack.c.l.b16 %v259
      %v828 = vunpack.c.l.b16 %v260
      %v829 = vunpack.c.l.b16 %v261
      %v830 = vunpack.c.l.b16 %v262
      %v831 = vunpack.c.l.b16 %v263
      %v832 = vunpack.c.l.b16 %v264
      %v833 = vunpack.c.l.b16 %v265
      %v834 = vunpack.c.l.b16 %v266
      %v835 = vunpack.c.l.b16 %v267
      %v836 = vunpack.c.l.b16 %v268
      %v837 = vunpack.c.l.b16 %v269
      %v838 = vunpack.c.l.b16 %v270
      %v839 = vunpack.c.l.b16 %v271
      %v840 = vunpack.c.l.b16 %v272
      %v841 = vunpack.c.l.b16 %v273
      %v842 = vunpack.c.l.b16 %v274
      %v843 = vunpack.c.l.b16 %v275
      %v844 = vunpack.c.l.b16 %v276
      %v845 = vunpack.c.l.b16 %v277
      %v846 = vunpack.c.l.b16 %v278
      %v847 = vunpack.c.l.b16 %v279
      %v848 = vunpack.c.l.b16 %v280
      %v849 = vunpack.c.l.b16 %v281
      %v850 = vunpack.c.l.b16 %v282
      %v851 = vunpack.c.l.b16 %v283
      %v852 = vunpack.c.l.b16 %v284
      %v853 = vunpack.c.l.b16 %v285
      %v854 = vunpack.c.l.b16 %v286
      %v855 = vunpack.c.l.b16 %v287
      %v856 = vunpack.c.l.b16 %v288
      %v857 = vunpack.c.l.b16 %v289
      %v858 = vunpack.c.l.b16 %v290
      %v859 = vunpack.c.l.b16 %v291
      %v860 = vunpack.c.l.b16 %v292
      %v861 = vunpack.c.l.b16 %v293
      %v862 = vunpack.c.l.b16 %v294
      %v863 = vunpack.c.l.b16 %v295
      %v864 = vunpack.c.l.b16 %v296
      %v865 = vunpack.c.l.b16 %v297
      %v866 = vunpack.c.l.b16 %v298
      %v867 = vunpack.c.l.b16 %v299
      %v868 = vunpack.c.l.b16 %v300
      %v869 = vunpack.c.l.b16 %v301
      %v870 = vunpack.c.l.b16 %v302
      %v871 = vunpack.c.l.b16 %v303
      %v872 = vunpack.c.l.b16 %v304
      %v873 = vunpack.c.l.b16 %v305
      %v874 = vunpack.c.l.b16 %v306
      %v875 = vunpack.c.l.b16 %v307
      %v876 = vunpack.c.l.b16 %v308
      %v877 = vunpack.c.l.b16 %v309
      %v878 = vunpack.c.l.b16 %v310
      %v879 = vunpack.c.l.b16 %v311
      %v880 = vunpack.c.l.b16 %v312
      %v881 = vunpack.c.l.b16 %v313
      %v882 = vunpack.c.l.b16 %v314
      %v883 = vunpack.c.l.b16 %v315
      %v884 = vunpack.c.l.b16 %v316
      %v885 = vunpack.c.l.b16 %v317
      %v886 = vunpack.c.l.b16 %v318
      %v887 = vunpack.c.l.b16 %v319
      %v888 = vunpack.c.l.b16 %v320
      %v889 = vunpack.c.l.b16 %v321
      %v890 = vunpack.c.l.b16 %v322
      %v891 = vunpack.c.l.b16 %v323
      %v892 = vunpack.c.l.b16 %v324
      %v893 = vunpack.c.l.b16 %v325
      %v894 = vunpack.c.l.b16 %v326
      %v895 = vunpack.c.l.b16 %v327
      %v896 = vunpack.c.l.b16 %v328
      %v897 = vunpack.c.l.b16 %v329
      %v898 = vunpack.c.l.b16 %v330
      %v899 = vunpack.c.l.b16 %v331
      %v900 = vunpack.c.l.b16 %v332
      %v901 = vunpack.c.l.b16 %v333
      %v902 = vunpack.c.l.b16 %v334
      %v903 = vunpack.c.l.b16 %v335
      %v904 = vunpack.c.l.b16 %v336
      %v905 = vunpack.c.l.b16 %v337
      %v906 = vunpack.c.l.b16 %v338
      %v907 = vunpack.c.l.b16 %v339
      %v908 = vunpack.c.l.b16 %v340
      %v909 = vunpack.c.l.b16 %v341
      %v910 = vunpack.c.l.b16 %v342
      %v911 = vunpack.c.l.b16 %v343
      %v912 = vunpack.c.l.b16 %v344
      %v913 = vunpack.c.l.b16 %v345
      %v914 = vunpack.c.l.b16 %v346
      %v915 = vunpack.c.l.b16 %v347
      %v916 = vunpack.c.l.b16 %v348
      %v917 = vunpack.c.l.b16 %v349
      %v918 = vunpack.c.l.b16 %v350
      %v919 = vunpack.c.l.b16 %v351
      %v920 = vunpack.c.l.b16 %v352
      %v921 = vunpack.c.l.b16 %v353
      %v922 = vunpack.c.l.b16 %v354
      %v923 = vunpack.c.l.b16 %v355
      %v924 = vunpack.c.l.b16 %v356
      %v925 = vunpack.c.l.b16 %v357
      %v926 = vunpack.c.l.b16 %v358
      %v927 = vunpack.c.l.b16 %v359
      %v928 = vunpack.c.l.b16 %v360
      %v929 = vunpack.c.l.b16 %v361
      %v930 = vunpack.c.l.b16 %v362
      %v931 = vunpack.c.l.b16 %v363
      %v932 = vunpack.c.l.b16 %v364
      %v933 = vunpack.c.l.b16 %v365
      %v934 = vunpack.c.l.b16 %v366
      %v935 = vunpack.c.l.b16 %v367
      %v936 = vunpack.c.l.b16 %v368
      %v937 = vunpack.c.l.b16 %v369
      %v938 = vunpack.c.l.b16 %v370
      %v939 = vunpack.c.l.b16 %v371
      %v940 = vunpack.c.l.b16 %v372
      %v941 = vunpack.c.l.b16 %v373
      %v942 = vunpack.c.l.b16 %v374
      %v943 = vunpack.c.l.b16 %v375
      %v944 = vunpack.c.l.b16 %v376
      %v945 = vunpack.c.l.b16 %v377
      %v946 = vunpack.c.l.b16 %v378
      %v947 = vunpack.c.l.b16 %v379
      %v948 = vunpack.c.l.b16 %v380
      %v949 = vunpack.c.l.b16 %v381
      %v950 = vunpack.c.l.b16 %v382
      %v951 = vunpack.c.l.b16 %v383
      %v952 = vunpack.c.l.b16 %v384
      %v953 = vunpack.c.l.b16 %v385
      %v954 = vunpack.c.l.b16 %v386
      %v955 = vunpack.c.l.b16 %v387
      %v956 = vunpack.c.l.b16 %v388
      %v957 = vunpack.c.l.b16 %v389
      %v958 = vunpack.c.l.b16 %v390
      %v959 = vunpack.c.l.b16 %v391
      %v960 = vunpack.c.l.b16 %v392
      %v961 = vunpack.c.l.b16 %v393
      %v962 = vunpack.c.l.b16 %v394
      %v963 = vunpack.c.l.b16 %v395
      %v964 = vunpack.c.l.b16 %v396
      %v965 = vunpack.c.l.b16 %v397
      %v966 = vunpack.c.l.b16 %v398
      %v967 = vunpack.c.l.b16 %v399
      %v968 = vunpack.c.l.b16 %v400
      %v969 = vunpack.c.l.b16 %v401
      %v970 = vunpack.c.l.b16 %v402
      %v971 = vunpack.c.l.b16 %v403
      %v972 = vunpack.c.l.b16 %v404
      %v973 = vunpack.c.l.b16 %v405
      %v974 = vunpack.c.l.b16 %v406
      %v975 = vunpack.c.l.b16 %v407
      %v976 = vunpack.c.l.b16 %v408
      %v977 = vunpack.c.l.b16 %v409
      %v978 = vunpack.c.l.b16 %v410
      %v979 = vunpack.c.l.b16 %v411
      %v980 = vunpack.c.l.b16 %v412
      %v981 = vunpack.c.l.b16 %v413
      %v982 = vunpack.c.l.b16 %v414
      %v983 = vunpack.c.l.b16 %v415
      %v984 = vunpack.c.l.b16 %v416
      %v985 = vunpack.c.l.b16 %v417
      %v986 = vunpack.c.l.b16 %v418
      %v987 = vunpack.c.l.b16 %v419
      %v988 = vunpack.c.l.b16 %v420
      %v989 = vunpack.c.l.b16 %v421
      %v990 = vunpack.c.l.b16 %v422
      %v991 = vunpack.c.l.b16 %v423
      %v992 = vunpack.c.l.b16 %v424
      %v993 = vunpack.c.l.b16 %v425
      %v994 = vunpack.c.l.b16 %v426
      %v995 = vunpack.c.l.b16 %v427
      %v996 = vunpack.c.l.b16 %v428
      %v997 = vunpack.c.l.b16 %v429
      %v998 = vunpack.c.l.b16 %v430
      %v999 = vunpack.c.l.b16 %v431
      %v1000 = vunpack.c.l.b16 %v432
      %v1001 = vunpack.c.l.b16 %v433
      %v1002 = vunpack.c.l.b16 %v434
      %v1003 = vunpack.c.l.b16 %v435
      %v1004 = vunpack.c.l.b16 %v436
      %v1005 = vunpack.c.l.b16 %v437
      %v1006 = vunpack.c.l.b16 %v438
      %v1007 = vunpack.c.l.b16 %v439
      %v1008 = vunpack.c.l.b16 %v440
      %v1009 = vunpack.c.l.b16 %v441
      %v1010 = vunpack.c.l.b16 %v442
      %v1011 = vunpack.c.l.b16 %v443
      %v1012 = vunpack.c.l.b16 %v444
      %v1013 = vunpack.c.l.b16 %v445
      %v1014 = vunpack.c.l.b16 %v446
      %v1015 = vunpack.c.l.b16 %v447
      %v1016 = vunpack.c.l.b16 %v448
      %v1017 = vunpack.c.l.b16 %v449
      %v1018 = vunpack.c.l.b16 %v450
      %v1019 = vunpack.c.l.b16 %v451
      %v1020 = vunpack.c.l.b16 %v452
      %v1021 = vunpack.c.l.b16 %v453
      %v1022 = vunpack.c.l.b16 %v454
      %v1023 = vunpack.c.l.b16 %v455
      %v1024 = vunpack.c.l.b16 %v456
      %v1025 = vunpack.c.l.b16 %v457
      %v1026 = vunpack.c.l.b16 %v458
      %v1027 = vunpack.c.l.b16 %v459
      %v1028 = vunpack.c.l.b16 %v460
      %v1029 = vunpack.c.l.b16 %v461
      %v1030 = vunpack.c.l.b16 %v462
      %v1031 = vunpack.c.l.b16 %v463
      %v1032 = vunpack.c.l.b16 %v464
      %v1033 = vunpack.c.l.b16 %v465
      %v1034 = vunpack.c.l.b16 %v466
      %v1035 = vunpack.c.l.b16 %v467
      %v1036 = vunpack.c.l.b16 %v468
      %v1037 = vunpack.c.l.b16 %v469
      %v1038 = vunpack.c.l.b16 %v470
      %v1039 = vunpack.c.l.b16 %v471
      %v1040 = vunpack.c.l.b16 %v472
      %v1041 = vunpack.c.l.b16 %v473
      %v1042 = vunpack.c.l.b16 %v474
      %v1043 = vunpack.c.l.b16 %v475
      %v1044 = vunpack.c.l.b16 %v476
      %v1045 = vunpack.c.l.b16 %v477
      %v1046 = vunpack.c.l.b16 %v478
      %v1047 = vunpack.c.l.b16 %v479
      %v1048 = vunpack.c.l.b16 %v480
      %v1049 = vunpack.c.l.b16 %v481
      %v1050 = vunpack.c.l.b16 %v482
      %v1051 = vunpack.c.l.b16 %v483
      %v1052 = vunpack.c.l.b16 %v484
      %v1053 = vunpack.c.l.b16 %v485
      %v1054 = vunpack.c.l.b16 %v486
      %v1055 = vunpack.c.l.b16 %v487
      %v1056 = vunpack.c.l.b16 %v488
      %v1057 = vunpack.c.l.b16 %v489
      %v1058 = vunpack.c.l.b16 %v490
      %v1059 = vunpack.c.l.b16 %v491
      %v1060 = vunpack.c.l.b16 %v492
      %v1061 = vunpack.c.l.b16 %v493
      %v1062 = vunpack.c.l.b16 %v494
      %v1063 = vunpack.c.l.b16 %v495
      %v1064 = vunpack.c.l.b16 %v496
      %v1065 = vunpack.c.l.b16 %v497
      %v1066 = vunpack.c.l.b16 %v498
      %v1067 = vunpack.c.l.b16 %v499
      %v1068 = vunpack.c.l.b16 %v500
      %v1069 = vunpack.c.l.b16 %v501
      %v1070 = vunpack.c.l.b16 %v502
      %v1071 = vunpack.c.l.b16 %v503
      %v1072 = vunpack.c.l.b16 %v504
      %v1073 = vpack.c.b16 %v818, %v817
      %v1074 = vpack.c.b16 %v820, %v819
      %v1075 = vpack.c.b16 %v822, %v821
      %v1076 = vpack.c.b16 %v824, %v823
      %v1077 = vpack.c.b16 %v826, %v825
      %v1078 = vpack.c.b16 %v828, %v827
      %v1079 = vpack.c.b16 %v830, %v829
      %v1080 = vpack.c.b16 %v832, %v831
      %v1081 = vpack.c.b16 %v834, %v833
      %v1082 = vpack.c.b16 %v836, %v835
      %v1083 = vpack.c.b16 %v838, %v837
      %v1084 = vpack.c.b16 %v840, %v839
      %v1085 = vpack.c.b16 %v842, %v841
      %v1086 = vpack.c.b16 %v844, %v843
      %v1087 = vpack.c.b16 %v846, %v845
      %v1088 = vpack.c.b16 %v848, %v847
      %v1089 = vpack.c.b16 %v850, %v849
      %v1090 = vpack.c.b16 %v852, %v851
      %v1091 = vpack.c.b16 %v854, %v853
      %v1092 = vpack.c.b16 %v856, %v855
      %v1093 = vpack.c.b16 %v858, %v857
      %v1094 = vpack.c.b16 %v860, %v859
      %v1095 = vpack.c.b16 %v862, %v861
      %v1096 = vpack.c.b16 %v864, %v863
      %v1097 = vpack.c.b16 %v866, %v865
      %v1098 = vpack.c.b16 %v868, %v867
      %v1099 = vpack.c.b16 %v870, %v869
      %v1100 = vpack.c.b16 %v872, %v871
      %v1101 = vpack.c.b16 %v874, %v873
      %v1102 = vpack.c.b16 %v876, %v875
      %v1103 = vpack.c.b16 %v878, %v877
      %v1104 = vpack.c.b16 %v880, %v879
      %v1105 = vpack.c.b16 %v882, %v881
      %v1106 = vpack.c.b16 %v884, %v883
      %v1107 = vpack.c.b16 %v886, %v885
      %v1108 = vpack.c.b16 %v888, %v887
      %v1109 = vpack.c.b16 %v890, %v889
      %v1110 = vpack.c.b16 %v892, %v891
      %v1111 = vpack.c.b16 %v894, %v893
      %v1112 = vpack.c.b16 %v896, %v895
      %v1113 = vpack.c.b16 %v898, %v897
      %v1114 = vpack.c.b16 %v900, %v899
      %v1115 = vpack.c.b16 %v902, %v901
      %v1116 = vpack.c.b16 %v904, %v903
      %v1117 = vpack.c.b16 %v906, %v905
      %v1118 = vpack.c.b16 %v908, %v907
      %v1119 = vpack.c.b16 %v910, %v909
      %v1120 = vpack.c.b16 %v912, %v911
      %v1121 = vpack.c.b16 %v914, %v913
      %v1122 = vpack.c.b16 %v916, %v915
      %v1123 = vpack.c.b16 %v918, %v917
      %v1124 = vpack.c.b16 %v920, %v919
      %v1125 = vpack.c.b16 %v922, %v921
      %v1126 = vpack.c.b16 %v924, %v923
      %v1127 = vpack.c.b16 %v926, %v925
      %v1128 = vpack.c.b16 %v928, %v927
      %v1129 = vpack.c.b16 %v930, %v929
      %v1130 = vpack.c.b16 %v932, %v931
      %v1131 = vpack.c.b16 %v934, %v933
      %v1132 = vpack.c.b16 %v936, %v935
      %v1133 = vpack.c.b16 %v938, %v937
      %v1134 = vpack.c.b16 %v940, %v939
      %v1135 = vpack.c.b16 %v942, %v941
      %v1136 = vpack.c.b16 %v944, %v943
      %v1137 = vpack.c.b16 %v946, %v945
      %v1138 = vpack.c.b16 %v948, %v947
      %v1139 = vpack.c.b16 %v950, %v949
      %v1140 = vpack.c.b16 %v952, %v951
      %v1141 = vpack.c.b16 %v954, %v953
      %v1142 = vpack.c.b16 %v956, %v955
      %v1143 = vpack.c.b16 %v958, %v957
      %v1144 = vpack.c.b16 %v960, %v959
      %v1145 = vpack.c.b16 %v962, %v961
      %v1146 = vpack.c.b16 %v964, %v963
      %v1147 = vpack.c.b16 %v966, %v965
      %v1148 = vpack.c.b16 %v968, %v967
      %v1149 = vpack.c.b16 %v970, %v969
      %v1150 = vpack.c.b16 %v972, %v971
      %v1151 = vpack.c.b16 %v974, %v973
      %v1152 = vpack.c.b16 %v976, %v975
      %v1153 = vpack.c.b16 %v978, %v977
      %v1154 = vpack.c.b16 %v980, %v979
      %v1155 = vpack.c.b16 %v982, %v981
      %v1156 = vpack.c.b16 %v984, %v983
      %v1157 = vpack.c.b16 %v986, %v985
      %v1158 = vpack.c.b16 %v988, %v987
      %v1159 = vpack.c.b16 %v990, %v989
      %v1160 = vpack.c.b16 %v992, %v991
      %v1161 = vpack.c.b16 %v994, %v993
      %v1162 = vpack.c.b16 %v996, %v995
      %v1163 = vpack.c.b16 %v998, %v997
      %v1164 = vpack.c.b16 %v1000, %v999
      %v1165 = vpack.c.b16 %v1002, %v1001
      %v1166 = vpack.c.b16 %v1004, %v1003
      %v1167 = vpack.c.b16 %v1006, %v1005
      %v1168 = vpack.c.b16 %v1008, %v1007
      %v1169 = vpack.c.b16 %v1010, %v1009
      %v1170 = vpack.c.b16 %v1012, %v1011
      %v1171 = vpack.c.b16 %v1014, %v1013
      %v1172 = vpack.c.b16 %v1016, %v1015
      %v1173 = vpack.c.b16 %v1018, %v1017
      %v1174 = vpack.c.b16 %v1020, %v1019
      %v1175 = vpack.c.b16 %v1022, %v1021
      %v1176 = vpack.c.b16 %v1024, %v1023
      %v1177 = vpack.c.b16 %v1026, %v1025
      %v1178 = vpack.c.b16 %v1028, %v1027
      %v1179 = vpack.c.b16 %v1030, %v1029
      %v1180 = vpack.c.b16 %v1032, %v1031
      %v1181 = vpack.c.b16 %v1034, %v1033
      %v1182 = vpack.c.b16 %v1036, %v1035
      %v1183 = vpack.c.b16 %v1038, %v1037
      %v1184 = vpack.c.b16 %v1040, %v1039
      %v1185 = vpack.c.b16 %v1042, %v1041
      %v1186 = vpack.c.b16 %v1044, %v1043
      %v1187 = vpack.c.b16 %v1046, %v1045
      %v1188 = vpack.c.b16 %v1048, %v1047
      %v1189 = vpack.c.b16 %v1050, %v1049
      %v1190 = vpack.c.b16 %v1052, %v1051
      %v1191 = vpack.c.b16 %v1054, %v1053
      %v1192 = vpack.c.b16 %v1056, %v1055
      %v1193 = vpack.c.b16 %v1058, %v1057
      %v1194 = vpack.c.b16 %v1060, %v1059
      %v1195 = vpack.c.b16 %v1062, %v1061
      %v1196 = vpack.c.b16 %v1064, %v1063
      %v1197 = vpack.c.b16 %v1066, %v1065
      %v1198 = vpack.c.b16 %v1068, %v1067
      %v1199 = vpack.c.b16 %v1070, %v1069
      %v1200 = vpack.c.b16 %v1072, %v1071
      %1329 = vmatprep.subr.bf16.mxu0 0
      %1330 = vmatpush1.bf16.msra.mxu0 %v1073
      %1331 = vmatprep.subr.bf16.mxu0 0
      %1332 = vmatpush1.bf16.msra.mxu0 %v1074
      %1333 = vmatprep.subr.bf16.mxu0 0
      %1334 = vmatpush1.bf16.msra.mxu0 %v1075
      %1335 = vmatprep.subr.bf16.mxu0 0
      %1336 = vmatpush1.bf16.msra.mxu0 %v1076
      %1337 = vmatprep.subr.bf16.mxu0 0
      %1338 = vmatpush1.bf16.msra.mxu0 %v1077
      %1339 = vmatprep.subr.bf16.mxu0 0
      %1340 = vmatpush1.bf16.msra.mxu0 %v1078
      %1341 = vmatprep.subr.bf16.mxu0 0
      %1342 = vmatpush1.bf16.msra.mxu0 %v1079
      %1343 = vmatprep.subr.bf16.mxu0 0
      %1344 = vmatpush1.bf16.msra.mxu0 %v1080
      %1345 = vmatprep.subr.bf16.mxu0 0
      %1346 = vmatpush1.bf16.msra.mxu0 %v1081
      %1347 = vmatprep.subr.bf16.mxu0 0
      %1348 = vmatpush1.bf16.msra.mxu0 %v1082
      %1349 = vmatprep.subr.bf16.mxu0 0
      %1350 = vmatpush1.bf16.msra.mxu0 %v1083
      %1351 = vmatprep.subr.bf16.mxu0 0
      %1352 = vmatpush1.bf16.msra.mxu0 %v1084
      %1353 = vmatprep.subr.bf16.mxu0 0
      %1354 = vmatpush1.bf16.msra.mxu0 %v1085
      %1355 = vmatprep.subr.bf16.mxu0 0
      %1356 = vmatpush1.bf16.msra.mxu0 %v1086
      %1357 = vmatprep.subr.bf16.mxu0 0
      %1358 = vmatpush1.bf16.msra.mxu0 %v1087
      %1359 = vmatprep.subr.bf16.mxu0 0
      %1360 = vmatpush1.bf16.msra.mxu0 %v1088
      %1361 = vmatprep.mubr.bf16.mxu0 %v530
      %1362 = vmatmul.mubr.bf16.gmra.mrb[0].mxu0 %v529
      %v1363 = vpop.f32.mrb[0].mxu0
      %v1364 = vadd.f32 0.0, %v1363
      %v1365 = vpop.f32.mrb[0].mxu0
      %v1366 = vpop.f32.mrb[0].mxu0
      %v1367 = vpop.f32.mrb[0].mxu0
      %1368 = vdwg.mxu0
      %1369 = vmatprep.subr.bf16.mxu0 0
      %1370 = vmatpush1.bf16.msra.mxu0 %v1089
      %1371 = vmatprep.subr.bf16.mxu0 0
      %1372 = vmatpush1.bf16.msra.mxu0 %v1090
      %1373 = vmatprep.subr.bf16.mxu0 0
      %1374 = vmatpush1.bf16.msra.mxu0 %v1091
      %1375 = vmatprep.subr.bf16.mxu0 0
      %1376 = vmatpush1.bf16.msra.mxu0 %v1092
      %1377 = vmatprep.subr.bf16.mxu0 0
      %1378 = vmatpush1.bf16.msra.mxu0 %v1093
      %1379 = vmatprep.subr.bf16.mxu0 0
      %1380 = vmatpush1.bf16.msra.mxu0 %v1094
      %1381 = vmatprep.subr.bf16.mxu0 0
      %1382 = vmatpush1.bf16.msra.mxu0 %v1095
      %1383 = vmatprep.subr.bf16.mxu0 0
      %1384 = vmatpush1.bf16.msra.mxu0 %v1096
      %1385 = vmatprep.subr.bf16.mxu0 0
      %1386 = vmatpush1.bf16.msra.mxu0 %v1097
      %1387 = vmatprep.subr.bf16.mxu0 0
      %1388 = vmatpush1.bf16.msra.mxu0 %v1098
      %1389 = vmatprep.subr.bf16.mxu0 0
      %1390 = vmatpush1.bf16.msra.mxu0 %v1099
      %1391 = vmatprep.subr.bf16.mxu0 0
      %1392 = vmatpush1.bf16.msra.mxu0 %v1100
      %1393 = vmatprep.subr.bf16.mxu0 0
      %1394 = vmatpush1.bf16.msra.mxu0 %v1101
      %1395 = vmatprep.subr.bf16.mxu0 0
      %1396 = vmatpush1.bf16.msra.mxu0 %v1102
      %1397 = vmatprep.subr.bf16.mxu0 0
      %1398 = vmatpush1.bf16.msra.mxu0 %v1103
      %1399 = vmatprep.subr.bf16.mxu0 0
      %1400 = vmatpush1.bf16.msra.mxu0 %v1104
      %1401 = vmatprep.mubr.bf16.mxu0 %v532
      %1402 = vmatmul.mubr.bf16.gmra.mrb[0].mxu0 %v531
      %v1403 = vpop.f32.mrb[0].mxu0
      %v1404 = vadd.f32 %v1364, %v1403
      %v1405 = vpop.f32.mrb[0].mxu0
      %v1406 = vpop.f32.mrb[0].mxu0
      %v1407 = vpop.f32.mrb[0].mxu0
      %1408 = vdwg.mxu0
      %1409 = vmatprep.subr.bf16.mxu0 0
      %1410 = vmatpush1.bf16.msra.mxu0 %v1105
      %1411 = vmatprep.subr.bf16.mxu0 0
      %1412 = vmatpush1.bf16.msra.mxu0 %v1106
      %1413 = vmatprep.subr.bf16.mxu0 0
      %1414 = vmatpush1.bf16.msra.mxu0 %v1107
      %1415 = vmatprep.subr.bf16.mxu0 0
      %1416 = vmatpush1.bf16.msra.mxu0 %v1108
      %1417 = vmatprep.subr.bf16.mxu0 0
      %1418 = vmatpush1.bf16.msra.mxu0 %v1109
      %1419 = vmatprep.subr.bf16.mxu0 0
      %1420 = vmatpush1.bf16.msra.mxu0 %v1110
      %1421 = vmatprep.subr.bf16.mxu0 0
      %1422 = vmatpush1.bf16.msra.mxu0 %v1111
      %1423 = vmatprep.subr.bf16.mxu0 0
      %1424 = vmatpush1.bf16.msra.mxu0 %v1112
      %1425 = vmatprep.subr.bf16.mxu0 0
      %1426 = vmatpush1.bf16.msra.mxu0 %v1113
      %1427 = vmatprep.subr.bf16.mxu0 0
      %1428 = vmatpush1.bf16.msra.mxu0 %v1114
      %1429 = vmatprep.subr.bf16.mxu0 0
      %1430 = vmatpush1.bf16.msra.mxu0 %v1115
      %1431 = vmatprep.subr.bf16.mxu0 0
      %1432 = vmatpush1.bf16.msra.mxu0 %v1116
      %1433 = vmatprep.subr.bf16.mxu0 0
      %1434 = vmatpush1.bf16.msra.mxu0 %v1117
      %1435 = vmatprep.subr.bf16.mxu0 0
      %1436 = vmatpush1.bf16.msra.mxu0 %v1118
      %1437 = vmatprep.subr.bf16.mxu0 0
      %1438 = vmatpush1.bf16.msra.mxu0 %v1119
      %1439 = vmatprep.subr.bf16.mxu0 0
      %1440 = vmatpush1.bf16.msra.mxu0 %v1120
      %1441 = vmatprep.mubr.bf16.mxu0 %v534
      %1442 = vmatmul.mubr.bf16.gmra.mrb[0].mxu0 %v533
      %v1443 = vpop.f32.mrb[0].mxu0
      %v1444 = vadd.f32 %v1404, %v1443
      %v1445 = vpop.f32.mrb[0].mxu0
      %v1446 = vpop.f32.mrb[0].mxu0
      %v1447 = vpop.f32.mrb[0].mxu0
      %1448 = vdwg.mxu0
      %1449 = vmatprep.subr.bf16.mxu0 0
      %1450 = vmatpush1.bf16.msra.mxu0 %v1121
      %1451 = vmatprep.subr.bf16.mxu0 0
      %1452 = vmatpush1.bf16.msra.mxu0 %v1122
      %1453 = vmatprep.subr.bf16.mxu0 0
      %1454 = vmatpush1.bf16.msra.mxu0 %v1123
      %1455 = vmatprep.subr.bf16.mxu0 0
      %1456 = vmatpush1.bf16.msra.mxu0 %v1124
      %1457 = vmatprep.subr.bf16.mxu0 0
      %1458 = vmatpush1.bf16.msra.mxu0 %v1125
      %1459 = vmatprep.subr.bf16.mxu0 0
      %1460 = vmatpush1.bf16.msra.mxu0 %v1126
      %1461 = vmatprep.subr.bf16.mxu0 0
      %1462 = vmatpush1.bf16.msra.mxu0 %v1127
      %1463 = vmatprep.subr.bf16.mxu0 0
      %1464 = vmatpush1.bf16.msra.mxu0 %v1128
      %1465 = vmatprep.subr.bf16.mxu0 0
      %1466 = vmatpush1.bf16.msra.mxu0 %v1129
      %1467 = vmatprep.subr.bf16.mxu0 0
      %1468 = vmatpush1.bf16.msra.mxu0 %v1130
      %1469 = vmatprep.subr.bf16.mxu0 0
      %1470 = vmatpush1.bf16.msra.mxu0 %v1131
      %1471 = vmatprep.subr.bf16.mxu0 0
      %1472 = vmatpush1.bf16.msra.mxu0 %v1132
      %1473 = vmatprep.subr.bf16.mxu0 0
      %1474 = vmatpush1.bf16.msra.mxu0 %v1133
      %1475 = vmatprep.subr.bf16.mxu0 0
      %1476 = vmatpush1.bf16.msra.mxu0 %v1134
      %1477 = vmatprep.subr.bf16.mxu0 0
      %1478 = vmatpush1.bf16.msra.mxu0 %v1135
      %1479 = vmatprep.subr.bf16.mxu0 0
      %1480 = vmatpush1.bf16.msra.mxu0 %v1136
      %1481 = vmatprep.mubr.bf16.mxu0 %v536
      %1482 = vmatmul.mubr.bf16.gmra.mrb[0].mxu0 %v535
      %v1483 = vpop.f32.mrb[0].mxu0
      %v1484 = vadd.f32 %v1444, %v1483
      %v1485 = vpop.f32.mrb[0].mxu0
      %v1486 = vpop.f32.mrb[0].mxu0
      %v1487 = vpop.f32.mrb[0].mxu0
      %1488 = vdwg.mxu0
      %1489 = vmatprep.subr.bf16.mxu0 0
      %1490 = vmatpush1.bf16.msra.mxu0 %v1137
      %1491 = vmatprep.subr.bf16.mxu0 0
      %1492 = vmatpush1.bf16.msra.mxu0 %v1138
      %1493 = vmatprep.subr.bf16.mxu0 0
      %1494 = vmatpush1.bf16.msra.mxu0 %v1139
      %1495 = vmatprep.subr.bf16.mxu0 0
      %1496 = vmatpush1.bf16.msra.mxu0 %v1140
      %1497 = vmatprep.subr.bf16.mxu0 0
      %1498 = vmatpush1.bf16.msra.mxu0 %v1141
      %1499 = vmatprep.subr.bf16.mxu0 0
      %1500 = vmatpush1.bf16.msra.mxu0 %v1142
      %1501 = vmatprep.subr.bf16.mxu0 0
      %1502 = vmatpush1.bf16.msra.mxu0 %v1143
      %1503 = vmatprep.subr.bf16.mxu0 0
      %1504 = vmatpush1.bf16.msra.mxu0 %v1144
      %1505 = vmatprep.subr.bf16.mxu0 0
      %1506 = vmatpush1.bf16.msra.mxu0 %v1145
      %1507 = vmatprep.subr.bf16.mxu0 0
      %1508 = vmatpush1.bf16.msra.mxu0 %v1146
      %1509 = vmatprep.subr.bf16.mxu0 0
      %1510 = vmatpush1.bf16.msra.mxu0 %v1147
      %1511 = vmatprep.subr.bf16.mxu0 0
      %1512 = vmatpush1.bf16.msra.mxu0 %v1148
      %1513 = vmatprep.subr.bf16.mxu0 0
      %1514 = vmatpush1.bf16.msra.mxu0 %v1149
      %1515 = vmatprep.subr.bf16.mxu0 0
      %1516 = vmatpush1.bf16.msra.mxu0 %v1150
      %1517 = vmatprep.subr.bf16.mxu0 0
      %1518 = vmatpush1.bf16.msra.mxu0 %v1151
      %1519 = vmatprep.subr.bf16.mxu0 0
      %1520 = vmatpush1.bf16.msra.mxu0 %v1152
      %1521 = vmatprep.mubr.bf16.mxu0 %v538
      %1522 = vmatmul.mubr.bf16.gmra.mrb[0].mxu0 %v537
      %v1523 = vpop.f32.mrb[0].mxu0
      %v1524 = vadd.f32 %v1484, %v1523
      %v1525 = vpop.f32.mrb[0].mxu0
      %v1526 = vpop.f32.mrb[0].mxu0
      %v1527 = vpop.f32.mrb[0].mxu0
      %1528 = vdwg.mxu0
      %1529 = vmatprep.subr.bf16.mxu0 0
      %1530 = vmatpush1.bf16.msra.mxu0 %v1153
      %1531 = vmatprep.subr.bf16.mxu0 0
      %1532 = vmatpush1.bf16.msra.mxu0 %v1154
      %1533 = vmatprep.subr.bf16.mxu0 0
      %1534 = vmatpush1.bf16.msra.mxu0 %v1155
      %1535 = vmatprep.subr.bf16.mxu0 0
      %1536 = vmatpush1.bf16.msra.mxu0 %v1156
      %1537 = vmatprep.subr.bf16.mxu0 0
      %1538 = vmatpush1.bf16.msra.mxu0 %v1157
      %1539 = vmatprep.subr.bf16.mxu0 0
      %1540 = vmatpush1.bf16.msra.mxu0 %v1158
      %1541 = vmatprep.subr.bf16.mxu0 0
      %1542 = vmatpush1.bf16.msra.mxu0 %v1159
      %1543 = vmatprep.subr.bf16.mxu0 0
      %1544 = vmatpush1.bf16.msra.mxu0 %v1160
      %1545 = vmatprep.subr.bf16.mxu0 0
      %1546 = vmatpush1.bf16.msra.mxu0 %v1161
      %1547 = vmatprep.subr.bf16.mxu0 0
      %1548 = vmatpush1.bf16.msra.mxu0 %v1162
      %1549 = vmatprep.subr.bf16.mxu0 0
      %1550 = vmatpush1.bf16.msra.mxu0 %v1163
      %1551 = vmatprep.subr.bf16.mxu0 0
      %1552 = vmatpush1.bf16.msra.mxu0 %v1164
      %1553 = vmatprep.subr.bf16.mxu0 0
      %1554 = vmatpush1.bf16.msra.mxu0 %v1165
      %1555 = vmatprep.subr.bf16.mxu0 0
      %1556 = vmatpush1.bf16.msra.mxu0 %v1166
      %1557 = vmatprep.subr.bf16.mxu0 0
      %1558 = vmatpush1.bf16.msra.mxu0 %v1167
      %1559 = vmatprep.subr.bf16.mxu0 0
      %1560 = vmatpush1.bf16.msra.mxu0 %v1168
      %1561 = vmatprep.mubr.bf16.mxu0 %v540
      %1562 = vmatmul.mubr.bf16.gmra.mrb[0].mxu0 %v539
      %v1563 = vpop.f32.mrb[0].mxu0
      %v1564 = vadd.f32 %v1524, %v1563
      %v1565 = vpop.f32.mrb[0].mxu0
      %v1566 = vpop.f32.mrb[0].mxu0
      %v1567 = vpop.f32.mrb[0].mxu0
      %1568 = vdwg.mxu0
      %1569 = vmatprep.subr.bf16.mxu0 0
      %1570 = vmatpush1.bf16.msra.mxu0 %v1169
      %1571 = vmatprep.subr.bf16.mxu0 0
      %1572 = vmatpush1.bf16.msra.mxu0 %v1170
      %1573 = vmatprep.subr.bf16.mxu0 0
      %1574 = vmatpush1.bf16.msra.mxu0 %v1171
      %1575 = vmatprep.subr.bf16.mxu0 0
      %1576 = vmatpush1.bf16.msra.mxu0 %v1172
      %1577 = vmatprep.subr.bf16.mxu0 0
      %1578 = vmatpush1.bf16.msra.mxu0 %v1173
      %1579 = vmatprep.subr.bf16.mxu0 0
      %1580 = vmatpush1.bf16.msra.mxu0 %v1174
      %1581 = vmatprep.subr.bf16.mxu0 0
      %1582 = vmatpush1.bf16.msra.mxu0 %v1175
      %1583 = vmatprep.subr.bf16.mxu0 0
      %1584 = vmatpush1.bf16.msra.mxu0 %v1176
      %1585 = vmatprep.subr.bf16.mxu0 0
      %1586 = vmatpush1.bf16.msra.mxu0 %v1177
      %1587 = vmatprep.subr.bf16.mxu0 0
      %1588 = vmatpush1.bf16.msra.mxu0 %v1178
      %1589 = vmatprep.subr.bf16.mxu0 0
      %1590 = vmatpush1.bf16.msra.mxu0 %v1179
      %1591 = vmatprep.subr.bf16.mxu0 0
      %1592 = vmatpush1.bf16.msra.mxu0 %v1180
      %1593 = vmatprep.subr.bf16.mxu0 0
      %1594 = vmatpush1.bf16.msra.mxu0 %v1181
      %1595 = vmatprep.subr.bf16.mxu0 0
      %1596 = vmatpush1.bf16.msra.mxu0 %v1182
      %1597 = vmatprep.subr.bf16.mxu0 0
      %1598 = vmatpush1.bf16.msra.mxu0 %v1183
      %1599 = vmatprep.subr.bf16.mxu0 0
      %1600 = vmatpush1.bf16.msra.mxu0 %v1184
      %1601 = vmatprep.mubr.bf16.mxu0 %v542
      %1602 = vmatmul.mubr.bf16.gmra.mrb[0].mxu0 %v541
      %v1603 = vpop.f32.mrb[0].mxu0
      %v1604 = vadd.f32 %v1564, %v1603
      %v1605 = vpop.f32.mrb[0].mxu0
      %v1606 = vpop.f32.mrb[0].mxu0
      %v1607 = vpop.f32.mrb[0].mxu0
      %1608 = vdwg.mxu0
      %1609 = vmatprep.subr.bf16.mxu0 0
      %1610 = vmatpush1.bf16.msra.mxu0 %v1185
      %1611 = vmatprep.subr.bf16.mxu0 0
      %1612 = vmatpush1.bf16.msra.mxu0 %v1186
      %1613 = vmatprep.subr.bf16.mxu0 0
      %1614 = vmatpush1.bf16.msra.mxu0 %v1187
      %1615 = vmatprep.subr.bf16.mxu0 0
      %1616 = vmatpush1.bf16.msra.mxu0 %v1188
      %1617 = vmatprep.subr.bf16.mxu0 0
      %1618 = vmatpush1.bf16.msra.mxu0 %v1189
      %1619 = vmatprep.subr.bf16.mxu0 0
      %1620 = vmatpush1.bf16.msra.mxu0 %v1190
      %1621 = vmatprep.subr.bf16.mxu0 0
      %1622 = vmatpush1.bf16.msra.mxu0 %v1191
      %1623 = vmatprep.subr.bf16.mxu0 0
      %1624 = vmatpush1.bf16.msra.mxu0 %v1192
      %1625 = vmatprep.subr.bf16.mxu0 0
      %1626 = vmatpush1.bf16.msra.mxu0 %v1193
      %1627 = vmatprep.subr.bf16.mxu0 0
      %1628 = vmatpush1.bf16.msra.mxu0 %v1194
      %1629 = vmatprep.subr.bf16.mxu0 0
      %1630 = vmatpush1.bf16.msra.mxu0 %v1195
      %1631 = vmatprep.subr.bf16.mxu0 0
      %1632 = vmatpush1.bf16.msra.mxu0 %v1196
      %1633 = vmatprep.subr.bf16.mxu0 0
      %1634 = vmatpush1.bf16.msra.mxu0 %v1197
      %1635 = vmatprep.subr.bf16.mxu0 0
      %1636 = vmatpush1.bf16.msra.mxu0 %v1198
      %1637 = vmatprep.subr.bf16.mxu0 0
      %1638 = vmatpush1.bf16.msra.mxu0 %v1199
      %1639 = vmatprep.subr.bf16.mxu0 0
      %1640 = vmatpush1.bf16.msra.mxu0 %v1200
      %1641 = vmatprep.mubr.bf16.mxu0 %v544
      %1642 = vmatmul.mubr.bf16.gmra.mrb[0].mxu0 %v543
      %v1643 = vpop.f32.mrb[0].mxu0
      %v1644 = vadd.f32 %v1604, %v1643
      %v1645 = vpop.f32.mrb[0].mxu0
      %v1646 = vpop.f32.mrb[0].mxu0
      %v1647 = vpop.f32.mrb[0].mxu0
      %1648 = vdwg.mxu0
      %v1649 = vadd.f32 %v240, %v1644
      %1650 = vst [vmem:[#allocation2] sm:$0xff] %v1649
      %p1651 = scmp.eq.s32.totalorder %s16, 7
      // Predicated region
      $region45: #{qhead_forward.1} parent=39 // pred_check
        %p1652 = pneg %p1651
      $region46: #{qhead_forward.1} parent=39 // pred_check_branch
        %1654 = sbr.rel (%p1652) target = $region48
      $region47: #{qhead_forward.1} parent=39 // pred_region
        %v1655 = vld [vmem:[#allocation2] sm:$0xff]
        %v1656 = vrot.slane %v1655, 4
        %v1657 = vadd.f32 %v1655, %v1656
        %v1658 = vrot.slane %v1657, 2
        %v1659 = vadd.f32 %v1657, %v1658
        %v1660 = vrot.slane %v1659, 1
        %v1661 = vadd.f32 %v1659, %v1660
        %v1662 = vmul.f32 %v1661, 0.5
        %v1663 = vmul.f32 %v1655, %v1655
        %v1664 = vrot.slane %v1663, 4
        %v1665 = vadd.f32 %v1663, %v1664
        %v1666 = vrot.slane %v1665, 2
        %v1667 = vadd.f32 %v1665, %v1666
        %v1668 = vrot.slane %v1667, 1
        %v1669 = vadd.f32 %v1667, %v1668
        %v1670 = vmul.f32 %v1669, 0.5
        %v1671 = vmul.f32 %v1662, %v1662
        %v1672 = vsub.f32 %v1670, %v1671
        %v1673 = vmax.f32 %v1672, 0.0
        %v1674 = vadd.f32 %v1673, 1e-05
        %v1675 = vrsqrt.pop %v1674
        %v1676 = vld [vmem:[%s2] sm:$0x3]
        %v1677 = vmul.f32 %v1676, %v1675
        %v1678 = vmul.f32 %v1662, %v1677
        %v1680 = vrot.slane %v1678, 7
        %v1682 = vsub.f32 %v1676, %v1680
        %v1683 = vlaneseq
        %v1684 = vshrl.u32 %v1683, 7
        %v1685 = vsub.s32 0, %v1684
        %v1686 = vrot.slane %v1677, %v1685
        %v1687 = vmul.f32 %v1655, %v1686
        %v1688 = vlaneseq
        %v1689 = vshrl.u32 %v1688, 7
        %v1690 = vsub.s32 1, %v1689
        %v1691 = vrot.slane %v1682, %v1690
        %v1692 = vadd.f32 %v1687, %v1691
        %vm1693 = vcmp.gt.f32.partialorder %v1692, 0.0
        %v1694 = vmul.f32 %v1692, 0.1
        %v1695 = vsel %vm1693, %v1692, %v1694
        %v1696 = vld [vmem:[%s3] sm:$0xff]
        %v1697 = vld [vmem:[%s3 + $0x8] sm:$0xff]
        %v1698 = vld [vmem:[%s3 + $0x10] sm:$0xff]
        %v1699 = vld [vmem:[%s3 + $0x18] sm:$0xff]
        %v1700 = vld [vmem:[%s3 + $0x20] sm:$0xff]
        %v1701 = vld [vmem:[%s3 + $0x28] sm:$0xff]
        %v1702 = vld [vmem:[%s3 + $0x30] sm:$0xff]
        %v1703 = vld [vmem:[%s3 + $0x38] sm:$0xff]
        %v1704 = vld [vmem:[%s3 + $0x40] sm:$0xff]
        %v1705 = vld [vmem:[%s3 + $0x48] sm:$0xff]
        %v1706 = vld [vmem:[%s3 + $0x50] sm:$0xff]
        %v1707 = vld [vmem:[%s3 + $0x58] sm:$0xff]
        %v1708 = vld [vmem:[%s3 + $0x60] sm:$0xff]
        %v1709 = vld [vmem:[%s3 + $0x68] sm:$0xff]
        %v1710 = vld [vmem:[%s3 + $0x70] sm:$0xff]
        %v1711 = vld [vmem:[%s3 + $0x78] sm:$0xff]
        %v1712 = vld [vmem:[%s4] sm:$0x1]
        %v1714 = vlaneseq
        %v1715 = vshrl.u32 %v1714, 7
        %v1716 = vsub.s32 0, %v1715
        %v1717 = vrot.slane %v1712, %v1716
        %1719 = vmatprep.subr.mxu0 0.0
        %1720 = vmatpush1.msra.mxu0 %v1696
        %1721 = vmatprep.subr.mxu0 0.0
        %1722 = vmatpush1.msra.mxu0 %v1697
        %1723 = vmatprep.subr.mxu0 0.0
        %1724 = vmatpush1.msra.mxu0 %v1698
        %1725 = vmatprep.subr.mxu0 0.0
        %1726 = vmatpush1.msra.mxu0 %v1699
        %1727 = vmatprep.subr.mxu0 0.0
        %1728 = vmatpush1.msra.mxu0 %v1700
        %1729 = vmatprep.subr.mxu0 0.0
        %1730 = vmatpush1.msra.mxu0 %v1701
        %1731 = vmatprep.subr.mxu0 0.0
        %1732 = vmatpush1.msra.mxu0 %v1702
        %1733 = vmatprep.subr.mxu0 0.0
        %1734 = vmatpush1.msra.mxu0 %v1703
        %1735 = vmatprep.subr.mxu0 0.0
        %1736 = vmatpush1.msra.mxu0 %v1704
        %1737 = vmatprep.subr.mxu0 0.0
        %1738 = vmatpush1.msra.mxu0 %v1705
        %1739 = vmatprep.subr.mxu0 0.0
        %1740 = vmatpush1.msra.mxu0 %v1706
        %1741 = vmatprep.subr.mxu0 0.0
        %1742 = vmatpush1.msra.mxu0 %v1707
        %1743 = vmatprep.subr.mxu0 0.0
        %1744 = vmatpush1.msra.mxu0 %v1708
        %1745 = vmatprep.subr.mxu0 0.0
        %1746 = vmatpush1.msra.mxu0 %v1709
        %1747 = vmatprep.subr.mxu0 0.0
        %1748 = vmatpush1.msra.mxu0 %v1710
        %1749 = vmatprep.subr.mxu0 0.0
        %1750 = vmatpush1.msra.mxu0 %v1711
        %1751 = vmatprep.subr.mxu0 0.0
        %1752 = vmatpush1.msra.mxu0 0.0
        %1753 = vmatprep.subr.mxu0 0.0
        %1754 = vmatpush1.msra.mxu0 0.0
        %1755 = vmatprep.subr.mxu0 0.0
        %1756 = vmatpush1.msra.mxu0 0.0
        %1757 = vmatprep.subr.mxu0 0.0
        %1758 = vmatpush1.msra.mxu0 0.0
        %1759 = vmatprep.subr.mxu0 0.0
        %1760 = vmatpush1.msra.mxu0 0.0
        %1761 = vmatprep.subr.mxu0 0.0
        %1762 = vmatpush1.msra.mxu0 0.0
        %1763 = vmatprep.subr.mxu0 0.0
        %1764 = vmatpush1.msra.mxu0 0.0
        %1765 = vmatprep.subr.mxu0 0.0
        %1766 = vmatpush1.msra.mxu0 0.0
        %1767 = vmatprep.subr.mxu0 0.0
        %1768 = vmatpush1.msra.mxu0 0.0
        %1769 = vmatprep.subr.mxu0 0.0
        %1770 = vmatpush1.msra.mxu0 0.0
        %1771 = vmatprep.subr.mxu0 0.0
        %1772 = vmatpush1.msra.mxu0 0.0
        %1773 = vmatprep.subr.mxu0 0.0
        %1774 = vmatpush1.msra.mxu0 0.0
        %1775 = vmatprep.subr.mxu0 0.0
        %1776 = vmatpush1.msra.mxu0 0.0
        %1777 = vmatprep.subr.mxu0 0.0
        %1778 = vmatpush1.msra.mxu0 0.0
        %1779 = vmatprep.subr.mxu0 0.0
        %1780 = vmatpush1.msra.mxu0 0.0
        %1781 = vmatprep.subr.mxu0 0.0
        %1782 = vmatpush1.msra.mxu0 0.0
        %1783 = vmatprep.mubr.f32.mxu0 0.0
        %1784 = vmatmul.mubr.f32.gmra.mrb[0].mxu0 %v1695
        %v1785 = vpop.f32.mrb[0].mxu0
        %v1786 = vadd.f32 %v1717, %v1785
        %v1787 = vpop.f32.mrb[0].mxu0
        %1788 = vdwg.mxu0
        %v1789 = vlaneseq
        %v1790 = vand.u32 %v1789, 127
        %vm1791 = vcmp.ge.s32.totalorder %v1790, 12
        %vm1792 = vcmp.lt.s32.totalorder %v1790, 14
        %vm1793 = vmand %vm1791, %vm1792
        %v1794 = vmul.f32 %v1786, 1.442695
        %v1795 = vpow.pop %v1794
        %v1796 = vsel %vm1793, %v1795, %v1786
        %1797 = vst [vmem:[%s5] sm:$0xff] %v1796
      $region48: #{qhead_forward.1} parent=39 // pred_fallthru
        _
      // Predicated region
      $region49: #{qhead_forward.1} parent=39 // pred_check
        %p1798 = pneg %p144
      $region50: #{qhead_forward.1} parent=39 // pred_check_branch
        %1800 = sbr.rel (%p1798) target = $region52
      $region51: #{qhead_forward.1} parent=39 // pred_region
        _
      $region52: #{qhead_forward.1} parent=39 // pred_fallthru
        _
      // Predicated region
      $region53: #{qhead_forward.1} parent=39 // pred_check
        %p1801 = pneg %p144
      $region54: #{qhead_forward.1} parent=39 // pred_check_branch
        %1803 = sbr.rel (%p1801) target = $region56
      $region55: #{qhead_forward.1} parent=39 // pred_region
        _
      $region56: #{qhead_forward.1} parent=39 // pred_fallthru
        _
    $region40: #{qhead_forward.1} parent=5 // pred_fallthru
      _
    %p1804 = scmp.le.s32.totalorder 2, %s11
    // Predicated region
    $region57: #{qhead_forward.1} parent=5 // pred_check
      %p1805 = pneg %p1804
    $region58: #{qhead_forward.1} parent=5 // pred_check_branch
      %1807 = sbr.rel (%p1805) target = $region60
    $region59: #{qhead_forward.1} parent=5 // pred_region
      %s1808 = ssub.s32 %s11, 2
    $region60: #{qhead_forward.1} parent=5 // pred_fallthru
      _
  $region6: #{qhead_forward.1} parent=0 // loop_footer
    %s15 = sadd.s32 1, %s11
  $region7: #{qhead_forward.1} parent=0 // loop_footer_branch
    %10 = sbr.rel target = $region3
  $region8: #{qhead_forward.1} parent=0 // loop_exit
    _

</llo_original>
